<compile_context>
chip_gen: v6e
topology: v6e:2x2x1
jax: 0.10.0
libtpu: 0.0.40
codegen_flags: <defaults>
</compile_context>

<pallas_src>
import math

import jax
import jax.numpy as jnp
from jax import lax
from jax.experimental import pallas as pl
from jax.experimental.pallas import tpu as pltpu

STATE_DIM = 12
ACTION_DIM = 8
HIDDEN = 32
BATCH = 2
SEQ = 8
LANE = 128  # TPU lane width; policy logits are padded to this for a dense store


# ----------------------------------------------------------------------------
# Deterministic parameter init (synthetic; mirrors the shapes/gains of the
# PyTorch module: orthogonal weights, zero LSTM biases, default Linear biases).
# ----------------------------------------------------------------------------
def orthogonal(key, rows, cols, gain=1.0):
    big, small = (rows, cols) if rows >= cols else (cols, rows)
    a = jax.random.normal(key, (big, small), dtype=jnp.float32)
    q, r = jnp.linalg.qr(a)
    q = q * jnp.sign(jnp.diagonal(r))[None, :]
    if rows < cols:
        q = q.T
    return (gain * q).astype(jnp.float32)


def make_params(key):
    ks = jax.random.split(key, 8)
    H, D, A = HIDDEN, STATE_DIM, ACTION_DIM
    # LSTM weights, PyTorch layout (4H, in) -> stored transposed for x @ W.
    w_ih = orthogonal(ks[0], 4 * H, D, 1.0).T            # (D, 4H)
    w_hh = orthogonal(ks[1], 4 * H, H, 1.0).T            # (H, 4H)
    b_lstm = jnp.zeros((1, 4 * H), jnp.float32)          # b_ih + b_hh (both 0)
    # layer_hidden
    w1 = orthogonal(ks[2], H, H, math.sqrt(2.0)).T       # (H, H)
    b1 = jax.random.uniform(ks[3], (1, H), jnp.float32,
                            -1.0 / math.sqrt(H), 1.0 / math.sqrt(H))
    # lin_policy
    w2 = orthogonal(ks[4], H, H, math.sqrt(2.0)).T       # (H, H)
    b2 = jax.random.uniform(ks[5], (1, H), jnp.float32,
                            -1.0 / math.sqrt(H), 1.0 / math.sqrt(H))
    # policy_layer
    w3 = orthogonal(ks[6], A, H, math.sqrt(0.01)).T      # (H, A)
    b3 = jax.random.uniform(ks[7], (1, A), jnp.float32,
                            -1.0 / math.sqrt(H), 1.0 / math.sqrt(H))
    return (w_ih, w_hh, b_lstm, w1, b1, w2, b2, w3, b3)


# ----------------------------------------------------------------------------
# Pallas kernel: lifted x-projection + unrolled LSTM (zero initial (h, c), as
# get_init_state does) + batched MLP head + masked log-softmax over the
# lane-padded action logits (== normalized Categorical log-probs).
# ----------------------------------------------------------------------------
def actor_kernel(x_ref, wih_ref, whh_ref, blstm_ref,
                 w1_ref, b1_ref, w2_ref, b2_ref, w3p_ref, b3p_ref,
                 out_ref, hs_ref):
    H = HIDDEN
    T = SEQ
    B = BATCH
    G = 4 * H

    # ---- Lifted input projection: one matmul + bias for all B*T rows. ----
    x = x_ref[...]                                               # (B*T, D)
    gates_x = (jnp.dot(x, wih_ref[...], preferred_element_type=jnp.float32)
               + blstm_ref[...])                                 # (B*T, 4H)
    gates_bt = gates_x.reshape(B, T, G)                          # row b*T+t -> [b, t]

    whh = whh_ref[...]                                           # (H, 4H)

    # ---- LSTM recurrence, statically unrolled (T = 8). ----
    h = jnp.zeros((B, H), jnp.float32)
    c = jnp.zeros((B, H), jnp.float32)
    for t in range(T):
        gates = gates_bt[:, t, :] + jnp.dot(
            h, whh, preferred_element_type=jnp.float32)          # (B, 4H)
        # One full-width sigmoid and one full-width tanh EUP push; gates are
        # then extracted as 32-lane slices (PyTorch order: i, f, g, o).
        sig = jax.nn.sigmoid(gates)
        th = jnp.tanh(gates)
        i_g = sig[:, 0 * H:1 * H]
        f_g = sig[:, 1 * H:2 * H]
        g_g = th[:, 2 * H:3 * H]
        o_g = sig[:, 3 * H:4 * H]
        c = f_g * c + i_g * g_g
        h = o_g * jnp.tanh(c)
        # Store h_t at rows {b*T + t}: matches torch (B, T, .) -> (B*T, .).
        for b in range(B):
            hs_ref[pl.ds(b * T + t, 1), :] = h[b:b + 1, :]

    # ---- Batched MLP head + log-softmax over all B*T rows at once. ----
    hseq = hs_ref[...]                                           # (B*T, H)
    z1 = jnp.maximum(
        jnp.dot(hseq, w1_ref[...], preferred_element_type=jnp.float32)
        + b1_ref[...], 0.0)
    z2 = jnp.maximum(
        jnp.dot(z1, w2_ref[...], preferred_element_type=jnp.float32)
        + b2_ref[...], 0.0)
    logits = (jnp.dot(z2, w3p_ref[...], preferred_element_type=jnp.float32)
              + b3p_ref[...])                                    # (B*T, 128) padded

    # Log-softmax over the first ACTION_DIM lanes only (rest is lane padding).
    lane_ids = lax.broadcasted_iota(jnp.int32, logits.shape, 1)
    valid = lane_ids < ACTION_DIM
    masked = jnp.where(valid, logits, jnp.float32(-1e30))
    m = jnp.max(masked, axis=-1, keepdims=True)
    e = jnp.where(valid, jnp.exp(masked - m), 0.0)
    lse = jnp.log(jnp.sum(e, axis=-1, keepdims=True))
    log_probs = jnp.where(valid, masked - m - lse, 0.0)
    out_ref[...] = log_probs                                     # one lane-dense store


def actor_forward(state_btd, params):
    """state_btd: (B, T, state_dim) float32 -> normalized logits (B*T, A)."""
    w_ih, w_hh, b_lstm, w1, b1, w2, b2, w3, b3 = params
    B, T, D = state_btd.shape
    # Row-major reshape is free (no transpose); row = b*T + t already.
    x_flat = state_btd.reshape(B * T, D).astype(jnp.float32)
    # Lane-pad the final layer so the kernel stores a full 128-lane slab.
    w3_pad = jnp.zeros((HIDDEN, LANE), jnp.float32).at[:, :ACTION_DIM].set(w3)
    b3_pad = jnp.zeros((1, LANE), jnp.float32).at[:, :ACTION_DIM].set(b3)

    vmem = pl.BlockSpec(memory_space=pltpu.MemorySpace.VMEM)
    out = pl.pallas_call(
        actor_kernel,
        out_shape=jax.ShapeDtypeStruct((B * T, LANE), jnp.float32),
        in_specs=[vmem] * 10,
        out_specs=vmem,
        scratch_shapes=[pltpu.VMEM((B * T, HIDDEN), jnp.float32)],
    )(x_flat, w_ih, w_hh, b_lstm, w1, b1, w2, b2, w3_pad, b3_pad)
    # Slice away the lane padding; rows are already in b*T + t order.
    return out[:, :ACTION_DIM]


# ----------------------------------------------------------------------------
# Pure-JAX reference (same math) for a correctness check.
# ----------------------------------------------------------------------------
def actor_reference(state_btd, params):
    wih, whh, b_lstm, w1, b1, w2, b2, w3, b3 = params
    B, T, _ = state_btd.shape
    H = HIDDEN
    h = jnp.zeros((B, H), jnp.float32)
    c = jnp.zeros((B, H), jnp.float32)
    hs = []
    for t in range(T):
        gates = state_btd[:, t, :] @ wih + h @ whh + b_lstm
        i_g = jax.nn.sigmoid(gates[:, 0 * H:1 * H])
        f_g = jax.nn.sigmoid(gates[:, 1 * H:2 * H])
        g_g = jnp.tanh(gates[:, 2 * H:3 * H])
        o_g = jax.nn.sigmoid(gates[:, 3 * H:4 * H])
        c = f_g * c + i_g * g_g
        h = o_g * jnp.tanh(c)
        hs.append(h)
    hseq = jnp.stack(hs, axis=1).reshape(B * T, H)
    z1 = jax.nn.relu(hseq @ w1 + b1)
    z2 = jax.nn.relu(z1 @ w2 + b2)
    logits = z2 @ w3 + b3
    return jax.nn.log_softmax(logits, axis=-1)


if __name__ == "__main__":
    key = jax.random.PRNGKey(0)
    pkey, xkey = jax.random.split(key)
    params = make_params(pkey)
    state = jax.random.normal(xkey, (BATCH, SEQ, STATE_DIM), dtype=jnp.float32)

    out = actor_forward(state, params)
    out = jax.block_until_ready(out)

    ref = actor_reference(state, params)
    assert out.shape == (BATCH * SEQ, ACTION_DIM)
    assert jnp.allclose(out, ref, atol=1e-4, rtol=1e-4), (
        float(jnp.max(jnp.abs(out - ref))))

    print("KERNEL_OK")
</pallas_src>

<mosaic_0001>
module attributes {stable_mosaic.version = 11 : i64} {
  func.func @actor_kernel(%arg0: memref<16x12xf32, #tpu.memory_space<vmem>>, %arg1: memref<12x128xf32, #tpu.memory_space<vmem>>, %arg2: memref<32x128xf32, #tpu.memory_space<vmem>>, %arg3: memref<1x128xf32, #tpu.memory_space<vmem>>, %arg4: memref<32x32xf32, #tpu.memory_space<vmem>>, %arg5: memref<1x32xf32, #tpu.memory_space<vmem>>, %arg6: memref<32x32xf32, #tpu.memory_space<vmem>>, %arg7: memref<1x32xf32, #tpu.memory_space<vmem>>, %arg8: memref<32x128xf32, #tpu.memory_space<vmem>>, %arg9: memref<1x128xf32, #tpu.memory_space<vmem>>, %arg10: memref<16x128xf32, #tpu.memory_space<vmem>>, %arg11: memref<16x32xf32, #tpu.memory_space<vmem>>) attributes {dimension_semantics = [], scalar_prefetch = 0 : i64, scratch_operands = 1 : i64, tpu.core_type = #tpu.core_type<tc>} {
    %c0 = arith.constant 0 : index
    %c0_0 = arith.constant 0 : index
    %0 = vector.load %arg0[%c0, %c0_0] : memref<16x12xf32, #tpu.memory_space<vmem>>, vector<16x12xf32>
    %c0_1 = arith.constant 0 : index
    %c0_2 = arith.constant 0 : index
    %1 = vector.load %arg1[%c0_1, %c0_2] : memref<12x128xf32, #tpu.memory_space<vmem>>, vector<12x128xf32>
    %cst = arith.constant dense<0.000000e+00> : vector<16x128xf32>
    %2 = tpu.matmul %0, %1, %cst {dimension_numbers = #tpu.dot_dimension_numbers<[1], [0], [0], [1], [0, 0, 1, 1], [], []>} : vector<16x12xf32>, vector<12x128xf32>, vector<16x128xf32> -> vector<16x128xf32>
    %c0_3 = arith.constant 0 : index
    %c0_4 = arith.constant 0 : index
    %3 = vector.load %arg3[%c0_3, %c0_4] : memref<1x128xf32, #tpu.memory_space<vmem>>, vector<1x128xf32>
    %4 = vector.broadcast %3 : vector<1x128xf32> to vector<16x128xf32>
    %5 = arith.addf %2, %4 : vector<16x128xf32>
    %6 = vector.shape_cast %5 : vector<16x128xf32> to vector<2x8x128xf32>
    %c0_5 = arith.constant 0 : index
    %c0_6 = arith.constant 0 : index
    %7 = vector.load %arg2[%c0_5, %c0_6] : memref<32x128xf32, #tpu.memory_space<vmem>>, vector<32x128xf32>
    %cst_7 = arith.constant 0.000000e+00 : f32
    %8 = vector.broadcast %cst_7 : f32 to vector<2x32xf32>
    %cst_8 = arith.constant 0.000000e+00 : f32
    %9 = vector.broadcast %cst_8 : f32 to vector<2x32xf32>
    %10 = vector.extract_strided_slice %6 {offsets = [0, 0, 0], sizes = [2, 1, 128], strides = [1, 1, 1]} : vector<2x8x128xf32> to vector<2x1x128xf32>
    %11 = vector.shape_cast %10 : vector<2x1x128xf32> to vector<2x128xf32>
    %cst_9 = arith.constant dense<0.000000e+00> : vector<2x128xf32>
    %12 = tpu.matmul %8, %7, %cst_9 {dimension_numbers = #tpu.dot_dimension_numbers<[1], [0], [0], [1], [0, 0, 1, 1], [], []>} : vector<2x32xf32>, vector<32x128xf32>, vector<2x128xf32> -> vector<2x128xf32>
    %13 = arith.addf %11, %12 : vector<2x128xf32>
    %14 = arith.negf %13 : vector<2x128xf32>
    %15 = math.exp %14 : vector<2x128xf32>
    %cst_10 = arith.constant 1.000000e+00 : f32
    %16 = vector.broadcast %cst_10 : f32 to vector<2x128xf32>
    %17 = arith.addf %16, %15 : vector<2x128xf32>
    %18 = arith.divf %16, %17 : vector<2x128xf32>
    %19 = math.tanh %13 : vector<2x128xf32>
    %20 = vector.extract_strided_slice %18 {offsets = [0, 0], sizes = [2, 32], strides = [1, 1]} : vector<2x128xf32> to vector<2x32xf32>
    %21 = vector.extract_strided_slice %18 {offsets = [0, 32], sizes = [2, 32], strides = [1, 1]} : vector<2x128xf32> to vector<2x32xf32>
    %22 = vector.extract_strided_slice %19 {offsets = [0, 64], sizes = [2, 32], strides = [1, 1]} : vector<2x128xf32> to vector<2x32xf32>
    %23 = vector.extract_strided_slice %18 {offsets = [0, 96], sizes = [2, 32], strides = [1, 1]} : vector<2x128xf32> to vector<2x32xf32>
    %24 = arith.mulf %21, %9 : vector<2x32xf32>
    %25 = arith.mulf %20, %22 : vector<2x32xf32>
    %26 = arith.addf %24, %25 : vector<2x32xf32>
    %27 = math.tanh %26 : vector<2x32xf32>
    %28 = arith.mulf %23, %27 : vector<2x32xf32>
    %29 = vector.extract_strided_slice %28 {offsets = [0, 0], sizes = [1, 32], strides = [1, 1]} : vector<2x32xf32> to vector<1x32xf32>
    %c0_11 = arith.constant 0 : index
    %c0_12 = arith.constant 0 : index
    %30 = vector.load %arg11[%c0_11, %c0_12] : memref<16x32xf32, #tpu.memory_space<vmem>>, vector<1x32xf32>
    tpu.vector_store %arg11[%c0_11, %c0_12], %29 {strides = array<i32>} : memref<16x32xf32, #tpu.memory_space<vmem>>, vector<1x32xf32>,
    %31 = vector.extract_strided_slice %28 {offsets = [1, 0], sizes = [1, 32], strides = [1, 1]} : vector<2x32xf32> to vector<1x32xf32>
    %c8 = arith.constant 8 : index
    %c0_13 = arith.constant 0 : index
    %32 = vector.load %arg11[%c8, %c0_13] : memref<16x32xf32, #tpu.memory_space<vmem>>, vector<1x32xf32>
    tpu.vector_store %arg11[%c8, %c0_13], %31 {strides = array<i32>} : memref<16x32xf32, #tpu.memory_space<vmem>>, vector<1x32xf32>,
    %33 = vector.extract_strided_slice %6 {offsets = [0, 1, 0], sizes = [2, 1, 128], strides = [1, 1, 1]} : vector<2x8x128xf32> to vector<2x1x128xf32>
    %34 = vector.shape_cast %33 : vector<2x1x128xf32> to vector<2x128xf32>
    %cst_14 = arith.constant dense<0.000000e+00> : vector<2x128xf32>
    %35 = tpu.matmul %28, %7, %cst_14 {dimension_numbers = #tpu.dot_dimension_numbers<[1], [0], [0], [1], [0, 0, 1, 1], [], []>} : vector<2x32xf32>, vector<32x128xf32>, vector<2x128xf32> -> vector<2x128xf32>
    %36 = arith.addf %34, %35 : vector<2x128xf32>
    %37 = arith.negf %36 : vector<2x128xf32>
    %38 = math.exp %37 : vector<2x128xf32>
    %cst_15 = arith.constant 1.000000e+00 : f32
    %39 = vector.broadcast %cst_15 : f32 to vector<2x128xf32>
    %40 = arith.addf %39, %38 : vector<2x128xf32>
    %41 = arith.divf %39, %40 : vector<2x128xf32>
    %42 = math.tanh %36 : vector<2x128xf32>
    %43 = vector.extract_strided_slice %41 {offsets = [0, 0], sizes = [2, 32], strides = [1, 1]} : vector<2x128xf32> to vector<2x32xf32>
    %44 = vector.extract_strided_slice %41 {offsets = [0, 32], sizes = [2, 32], strides = [1, 1]} : vector<2x128xf32> to vector<2x32xf32>
    %45 = vector.extract_strided_slice %42 {offsets = [0, 64], sizes = [2, 32], strides = [1, 1]} : vector<2x128xf32> to vector<2x32xf32>
    %46 = vector.extract_strided_slice %41 {offsets = [0, 96], sizes = [2, 32], strides = [1, 1]} : vector<2x128xf32> to vector<2x32xf32>
    %47 = arith.mulf %44, %26 : vector<2x32xf32>
    %48 = arith.mulf %43, %45 : vector<2x32xf32>
    %49 = arith.addf %47, %48 : vector<2x32xf32>
    %50 = math.tanh %49 : vector<2x32xf32>
    %51 = arith.mulf %46, %50 : vector<2x32xf32>
    %52 = vector.extract_strided_slice %51 {offsets = [0, 0], sizes = [1, 32], strides = [1, 1]} : vector<2x32xf32> to vector<1x32xf32>
    %c1 = arith.constant 1 : index
    %c0_16 = arith.constant 0 : index
    %53 = vector.load %arg11[%c1, %c0_16] : memref<16x32xf32, #tpu.memory_space<vmem>>, vector<1x32xf32>
    tpu.vector_store %arg11[%c1, %c0_16], %52 {strides = array<i32>} : memref<16x32xf32, #tpu.memory_space<vmem>>, vector<1x32xf32>,
    %54 = vector.extract_strided_slice %51 {offsets = [1, 0], sizes = [1, 32], strides = [1, 1]} : vector<2x32xf32> to vector<1x32xf32>
    %c9 = arith.constant 9 : index
    %c0_17 = arith.constant 0 : index
    %55 = vector.load %arg11[%c9, %c0_17] : memref<16x32xf32, #tpu.memory_space<vmem>>, vector<1x32xf32>
    tpu.vector_store %arg11[%c9, %c0_17], %54 {strides = array<i32>} : memref<16x32xf32, #tpu.memory_space<vmem>>, vector<1x32xf32>,
    %56 = vector.extract_strided_slice %6 {offsets = [0, 2, 0], sizes = [2, 1, 128], strides = [1, 1, 1]} : vector<2x8x128xf32> to vector<2x1x128xf32>
    %57 = vector.shape_cast %56 : vector<2x1x128xf32> to vector<2x128xf32>
    %cst_18 = arith.constant dense<0.000000e+00> : vector<2x128xf32>
    %58 = tpu.matmul %51, %7, %cst_18 {dimension_numbers = #tpu.dot_dimension_numbers<[1], [0], [0], [1], [0, 0, 1, 1], [], []>} : vector<2x32xf32>, vector<32x128xf32>, vector<2x128xf32> -> vector<2x128xf32>
    %59 = arith.addf %57, %58 : vector<2x128xf32>
    %60 = arith.negf %59 : vector<2x128xf32>
    %61 = math.exp %60 : vector<2x128xf32>
    %cst_19 = arith.constant 1.000000e+00 : f32
    %62 = vector.broadcast %cst_19 : f32 to vector<2x128xf32>
    %63 = arith.addf %62, %61 : vector<2x128xf32>
    %64 = arith.divf %62, %63 : vector<2x128xf32>
    %65 = math.tanh %59 : vector<2x128xf32>
    %66 = vector.extract_strided_slice %64 {offsets = [0, 0], sizes = [2, 32], strides = [1, 1]} : vector<2x128xf32> to vector<2x32xf32>
    %67 = vector.extract_strided_slice %64 {offsets = [0, 32], sizes = [2, 32], strides = [1, 1]} : vector<2x128xf32> to vector<2x32xf32>
    %68 = vector.extract_strided_slice %65 {offsets = [0, 64], sizes = [2, 32], strides = [1, 1]} : vector<2x128xf32> to vector<2x32xf32>
    %69 = vector.extract_strided_slice %64 {offsets = [0, 96], sizes = [2, 32], strides = [1, 1]} : vector<2x128xf32> to vector<2x32xf32>
    %70 = arith.mulf %67, %49 : vector<2x32xf32>
    %71 = arith.mulf %66, %68 : vector<2x32xf32>
    %72 = arith.addf %70, %71 : vector<2x32xf32>
    %73 = math.tanh %72 : vector<2x32xf32>
    %74 = arith.mulf %69, %73 : vector<2x32xf32>
    %75 = vector.extract_strided_slice %74 {offsets = [0, 0], sizes = [1, 32], strides = [1, 1]} : vector<2x32xf32> to vector<1x32xf32>
    %c2 = arith.constant 2 : index
    %c0_20 = arith.constant 0 : index
    %76 = vector.load %arg11[%c2, %c0_20] : memref<16x32xf32, #tpu.memory_space<vmem>>, vector<1x32xf32>
    tpu.vector_store %arg11[%c2, %c0_20], %75 {strides = array<i32>} : memref<16x32xf32, #tpu.memory_space<vmem>>, vector<1x32xf32>,
    %77 = vector.extract_strided_slice %74 {offsets = [1, 0], sizes = [1, 32], strides = [1, 1]} : vector<2x32xf32> to vector<1x32xf32>
    %c10 = arith.constant 10 : index
    %c0_21 = arith.constant 0 : index
    %78 = vector.load %arg11[%c10, %c0_21] : memref<16x32xf32, #tpu.memory_space<vmem>>, vector<1x32xf32>
    tpu.vector_store %arg11[%c10, %c0_21], %77 {strides = array<i32>} : memref<16x32xf32, #tpu.memory_space<vmem>>, vector<1x32xf32>,
    %79 = vector.extract_strided_slice %6 {offsets = [0, 3, 0], sizes = [2, 1, 128], strides = [1, 1, 1]} : vector<2x8x128xf32> to vector<2x1x128xf32>
    %80 = vector.shape_cast %79 : vector<2x1x128xf32> to vector<2x128xf32>
    %cst_22 = arith.constant dense<0.000000e+00> : vector<2x128xf32>
    %81 = tpu.matmul %74, %7, %cst_22 {dimension_numbers = #tpu.dot_dimension_numbers<[1], [0], [0], [1], [0, 0, 1, 1], [], []>} : vector<2x32xf32>, vector<32x128xf32>, vector<2x128xf32> -> vector<2x128xf32>
    %82 = arith.addf %80, %81 : vector<2x128xf32>
    %83 = arith.negf %82 : vector<2x128xf32>
    %84 = math.exp %83 : vector<2x128xf32>
    %cst_23 = arith.constant 1.000000e+00 : f32
    %85 = vector.broadcast %cst_23 : f32 to vector<2x128xf32>
    %86 = arith.addf %85, %84 : vector<2x128xf32>
    %87 = arith.divf %85, %86 : vector<2x128xf32>
    %88 = math.tanh %82 : vector<2x128xf32>
    %89 = vector.extract_strided_slice %87 {offsets = [0, 0], sizes = [2, 32], strides = [1, 1]} : vector<2x128xf32> to vector<2x32xf32>
    %90 = vector.extract_strided_slice %87 {offsets = [0, 32], sizes = [2, 32], strides = [1, 1]} : vector<2x128xf32> to vector<2x32xf32>
    %91 = vector.extract_strided_slice %88 {offsets = [0, 64], sizes = [2, 32], strides = [1, 1]} : vector<2x128xf32> to vector<2x32xf32>
    %92 = vector.extract_strided_slice %87 {offsets = [0, 96], sizes = [2, 32], strides = [1, 1]} : vector<2x128xf32> to vector<2x32xf32>
    %93 = arith.mulf %90, %72 : vector<2x32xf32>
    %94 = arith.mulf %89, %91 : vector<2x32xf32>
    %95 = arith.addf %93, %94 : vector<2x32xf32>
    %96 = math.tanh %95 : vector<2x32xf32>
    %97 = arith.mulf %92, %96 : vector<2x32xf32>
    %98 = vector.extract_strided_slice %97 {offsets = [0, 0], sizes = [1, 32], strides = [1, 1]} : vector<2x32xf32> to vector<1x32xf32>
    %c3 = arith.constant 3 : index
    %c0_24 = arith.constant 0 : index
    %99 = vector.load %arg11[%c3, %c0_24] : memref<16x32xf32, #tpu.memory_space<vmem>>, vector<1x32xf32>
    tpu.vector_store %arg11[%c3, %c0_24], %98 {strides = array<i32>} : memref<16x32xf32, #tpu.memory_space<vmem>>, vector<1x32xf32>,
    %100 = vector.extract_strided_slice %97 {offsets = [1, 0], sizes = [1, 32], strides = [1, 1]} : vector<2x32xf32> to vector<1x32xf32>
    %c11 = arith.constant 11 : index
    %c0_25 = arith.constant 0 : index
    %101 = vector.load %arg11[%c11, %c0_25] : memref<16x32xf32, #tpu.memory_space<vmem>>, vector<1x32xf32>
    tpu.vector_store %arg11[%c11, %c0_25], %100 {strides = array<i32>} : memref<16x32xf32, #tpu.memory_space<vmem>>, vector<1x32xf32>,
    %102 = vector.extract_strided_slice %6 {offsets = [0, 4, 0], sizes = [2, 1, 128], strides = [1, 1, 1]} : vector<2x8x128xf32> to vector<2x1x128xf32>
    %103 = vector.shape_cast %102 : vector<2x1x128xf32> to vector<2x128xf32>
    %cst_26 = arith.constant dense<0.000000e+00> : vector<2x128xf32>
    %104 = tpu.matmul %97, %7, %cst_26 {dimension_numbers = #tpu.dot_dimension_numbers<[1], [0], [0], [1], [0, 0, 1, 1], [], []>} : vector<2x32xf32>, vector<32x128xf32>, vector<2x128xf32> -> vector<2x128xf32>
    %105 = arith.addf %103, %104 : vector<2x128xf32>
    %106 = arith.negf %105 : vector<2x128xf32>
    %107 = math.exp %106 : vector<2x128xf32>
    %cst_27 = arith.constant 1.000000e+00 : f32
    %108 = vector.broadcast %cst_27 : f32 to vector<2x128xf32>
    %109 = arith.addf %108, %107 : vector<2x128xf32>
    %110 = arith.divf %108, %109 : vector<2x128xf32>
    %111 = math.tanh %105 : vector<2x128xf32>
    %112 = vector.extract_strided_slice %110 {offsets = [0, 0], sizes = [2, 32], strides = [1, 1]} : vector<2x128xf32> to vector<2x32xf32>
    %113 = vector.extract_strided_slice %110 {offsets = [0, 32], sizes = [2, 32], strides = [1, 1]} : vector<2x128xf32> to vector<2x32xf32>
    %114 = vector.extract_strided_slice %111 {offsets = [0, 64], sizes = [2, 32], strides = [1, 1]} : vector<2x128xf32> to vector<2x32xf32>
    %115 = vector.extract_strided_slice %110 {offsets = [0, 96], sizes = [2, 32], strides = [1, 1]} : vector<2x128xf32> to vector<2x32xf32>
    %116 = arith.mulf %113, %95 : vector<2x32xf32>
    %117 = arith.mulf %112, %114 : vector<2x32xf32>
    %118 = arith.addf %116, %117 : vector<2x32xf32>
    %119 = math.tanh %118 : vector<2x32xf32>
    %120 = arith.mulf %115, %119 : vector<2x32xf32>
    %121 = vector.extract_strided_slice %120 {offsets = [0, 0], sizes = [1, 32], strides = [1, 1]} : vector<2x32xf32> to vector<1x32xf32>
    %c4 = arith.constant 4 : index
    %c0_28 = arith.constant 0 : index
    %122 = vector.load %arg11[%c4, %c0_28] : memref<16x32xf32, #tpu.memory_space<vmem>>, vector<1x32xf32>
    tpu.vector_store %arg11[%c4, %c0_28], %121 {strides = array<i32>} : memref<16x32xf32, #tpu.memory_space<vmem>>, vector<1x32xf32>,
    %123 = vector.extract_strided_slice %120 {offsets = [1, 0], sizes = [1, 32], strides = [1, 1]} : vector<2x32xf32> to vector<1x32xf32>
    %c12 = arith.constant 12 : index
    %c0_29 = arith.constant 0 : index
    %124 = vector.load %arg11[%c12, %c0_29] : memref<16x32xf32, #tpu.memory_space<vmem>>, vector<1x32xf32>
    tpu.vector_store %arg11[%c12, %c0_29], %123 {strides = array<i32>} : memref<16x32xf32, #tpu.memory_space<vmem>>, vector<1x32xf32>,
    %125 = vector.extract_strided_slice %6 {offsets = [0, 5, 0], sizes = [2, 1, 128], strides = [1, 1, 1]} : vector<2x8x128xf32> to vector<2x1x128xf32>
    %126 = vector.shape_cast %125 : vector<2x1x128xf32> to vector<2x128xf32>
    %cst_30 = arith.constant dense<0.000000e+00> : vector<2x128xf32>
    %127 = tpu.matmul %120, %7, %cst_30 {dimension_numbers = #tpu.dot_dimension_numbers<[1], [0], [0], [1], [0, 0, 1, 1], [], []>} : vector<2x32xf32>, vector<32x128xf32>, vector<2x128xf32> -> vector<2x128xf32>
    %128 = arith.addf %126, %127 : vector<2x128xf32>
    %129 = arith.negf %128 : vector<2x128xf32>
    %130 = math.exp %129 : vector<2x128xf32>
    %cst_31 = arith.constant 1.000000e+00 : f32
    %131 = vector.broadcast %cst_31 : f32 to vector<2x128xf32>
    %132 = arith.addf %131, %130 : vector<2x128xf32>
    %133 = arith.divf %131, %132 : vector<2x128xf32>
    %134 = math.tanh %128 : vector<2x128xf32>
    %135 = vector.extract_strided_slice %133 {offsets = [0, 0], sizes = [2, 32], strides = [1, 1]} : vector<2x128xf32> to vector<2x32xf32>
    %136 = vector.extract_strided_slice %133 {offsets = [0, 32], sizes = [2, 32], strides = [1, 1]} : vector<2x128xf32> to vector<2x32xf32>
    %137 = vector.extract_strided_slice %134 {offsets = [0, 64], sizes = [2, 32], strides = [1, 1]} : vector<2x128xf32> to vector<2x32xf32>
    %138 = vector.extract_strided_slice %133 {offsets = [0, 96], sizes = [2, 32], strides = [1, 1]} : vector<2x128xf32> to vector<2x32xf32>
    %139 = arith.mulf %136, %118 : vector<2x32xf32>
    %140 = arith.mulf %135, %137 : vector<2x32xf32>
    %141 = arith.addf %139, %140 : vector<2x32xf32>
    %142 = math.tanh %141 : vector<2x32xf32>
    %143 = arith.mulf %138, %142 : vector<2x32xf32>
    %144 = vector.extract_strided_slice %143 {offsets = [0, 0], sizes = [1, 32], strides = [1, 1]} : vector<2x32xf32> to vector<1x32xf32>
    %c5 = arith.constant 5 : index
    %c0_32 = arith.constant 0 : index
    %145 = vector.load %arg11[%c5, %c0_32] : memref<16x32xf32, #tpu.memory_space<vmem>>, vector<1x32xf32>
    tpu.vector_store %arg11[%c5, %c0_32], %144 {strides = array<i32>} : memref<16x32xf32, #tpu.memory_space<vmem>>, vector<1x32xf32>,
    %146 = vector.extract_strided_slice %143 {offsets = [1, 0], sizes = [1, 32], strides = [1, 1]} : vector<2x32xf32> to vector<1x32xf32>
    %c13 = arith.constant 13 : index
    %c0_33 = arith.constant 0 : index
    %147 = vector.load %arg11[%c13, %c0_33] : memref<16x32xf32, #tpu.memory_space<vmem>>, vector<1x32xf32>
    tpu.vector_store %arg11[%c13, %c0_33], %146 {strides = array<i32>} : memref<16x32xf32, #tpu.memory_space<vmem>>, vector<1x32xf32>,
    %148 = vector.extract_strided_slice %6 {offsets = [0, 6, 0], sizes = [2, 1, 128], strides = [1, 1, 1]} : vector<2x8x128xf32> to vector<2x1x128xf32>
    %149 = vector.shape_cast %148 : vector<2x1x128xf32> to vector<2x128xf32>
    %cst_34 = arith.constant dense<0.000000e+00> : vector<2x128xf32>
    %150 = tpu.matmul %143, %7, %cst_34 {dimension_numbers = #tpu.dot_dimension_numbers<[1], [0], [0], [1], [0, 0, 1, 1], [], []>} : vector<2x32xf32>, vector<32x128xf32>, vector<2x128xf32> -> vector<2x128xf32>
    %151 = arith.addf %149, %150 : vector<2x128xf32>
    %152 = arith.negf %151 : vector<2x128xf32>
    %153 = math.exp %152 : vector<2x128xf32>
    %cst_35 = arith.constant 1.000000e+00 : f32
    %154 = vector.broadcast %cst_35 : f32 to vector<2x128xf32>
    %155 = arith.addf %154, %153 : vector<2x128xf32>
    %156 = arith.divf %154, %155 : vector<2x128xf32>
    %157 = math.tanh %151 : vector<2x128xf32>
    %158 = vector.extract_strided_slice %156 {offsets = [0, 0], sizes = [2, 32], strides = [1, 1]} : vector<2x128xf32> to vector<2x32xf32>
    %159 = vector.extract_strided_slice %156 {offsets = [0, 32], sizes = [2, 32], strides = [1, 1]} : vector<2x128xf32> to vector<2x32xf32>
    %160 = vector.extract_strided_slice %157 {offsets = [0, 64], sizes = [2, 32], strides = [1, 1]} : vector<2x128xf32> to vector<2x32xf32>
    %161 = vector.extract_strided_slice %156 {offsets = [0, 96], sizes = [2, 32], strides = [1, 1]} : vector<2x128xf32> to vector<2x32xf32>
    %162 = arith.mulf %159, %141 : vector<2x32xf32>
    %163 = arith.mulf %158, %160 : vector<2x32xf32>
    %164 = arith.addf %162, %163 : vector<2x32xf32>
    %165 = math.tanh %164 : vector<2x32xf32>
    %166 = arith.mulf %161, %165 : vector<2x32xf32>
    %167 = vector.extract_strided_slice %166 {offsets = [0, 0], sizes = [1, 32], strides = [1, 1]} : vector<2x32xf32> to vector<1x32xf32>
    %c6 = arith.constant 6 : index
    %c0_36 = arith.constant 0 : index
    %168 = vector.load %arg11[%c6, %c0_36] : memref<16x32xf32, #tpu.memory_space<vmem>>, vector<1x32xf32>
    tpu.vector_store %arg11[%c6, %c0_36], %167 {strides = array<i32>} : memref<16x32xf32, #tpu.memory_space<vmem>>, vector<1x32xf32>,
    %169 = vector.extract_strided_slice %166 {offsets = [1, 0], sizes = [1, 32], strides = [1, 1]} : vector<2x32xf32> to vector<1x32xf32>
    %c14 = arith.constant 14 : index
    %c0_37 = arith.constant 0 : index
    %170 = vector.load %arg11[%c14, %c0_37] : memref<16x32xf32, #tpu.memory_space<vmem>>, vector<1x32xf32>
    tpu.vector_store %arg11[%c14, %c0_37], %169 {strides = array<i32>} : memref<16x32xf32, #tpu.memory_space<vmem>>, vector<1x32xf32>,
    %171 = vector.extract_strided_slice %6 {offsets = [0, 7, 0], sizes = [2, 1, 128], strides = [1, 1, 1]} : vector<2x8x128xf32> to vector<2x1x128xf32>
    %172 = vector.shape_cast %171 : vector<2x1x128xf32> to vector<2x128xf32>
    %cst_38 = arith.constant dense<0.000000e+00> : vector<2x128xf32>
    %173 = tpu.matmul %166, %7, %cst_38 {dimension_numbers = #tpu.dot_dimension_numbers<[1], [0], [0], [1], [0, 0, 1, 1], [], []>} : vector<2x32xf32>, vector<32x128xf32>, vector<2x128xf32> -> vector<2x128xf32>
    %174 = arith.addf %172, %173 : vector<2x128xf32>
    %175 = arith.negf %174 : vector<2x128xf32>
    %176 = math.exp %175 : vector<2x128xf32>
    %cst_39 = arith.constant 1.000000e+00 : f32
    %177 = vector.broadcast %cst_39 : f32 to vector<2x128xf32>
    %178 = arith.addf %177, %176 : vector<2x128xf32>
    %179 = arith.divf %177, %178 : vector<2x128xf32>
    %180 = math.tanh %174 : vector<2x128xf32>
    %181 = vector.extract_strided_slice %179 {offsets = [0, 0], sizes = [2, 32], strides = [1, 1]} : vector<2x128xf32> to vector<2x32xf32>
    %182 = vector.extract_strided_slice %179 {offsets = [0, 32], sizes = [2, 32], strides = [1, 1]} : vector<2x128xf32> to vector<2x32xf32>
    %183 = vector.extract_strided_slice %180 {offsets = [0, 64], sizes = [2, 32], strides = [1, 1]} : vector<2x128xf32> to vector<2x32xf32>
    %184 = vector.extract_strided_slice %179 {offsets = [0, 96], sizes = [2, 32], strides = [1, 1]} : vector<2x128xf32> to vector<2x32xf32>
    %185 = arith.mulf %182, %164 : vector<2x32xf32>
    %186 = arith.mulf %181, %183 : vector<2x32xf32>
    %187 = arith.addf %185, %186 : vector<2x32xf32>
    %188 = math.tanh %187 : vector<2x32xf32>
    %189 = arith.mulf %184, %188 : vector<2x32xf32>
    %190 = vector.extract_strided_slice %189 {offsets = [0, 0], sizes = [1, 32], strides = [1, 1]} : vector<2x32xf32> to vector<1x32xf32>
    %c7 = arith.constant 7 : index
    %c0_40 = arith.constant 0 : index
    %191 = vector.load %arg11[%c7, %c0_40] : memref<16x32xf32, #tpu.memory_space<vmem>>, vector<1x32xf32>
    tpu.vector_store %arg11[%c7, %c0_40], %190 {strides = array<i32>} : memref<16x32xf32, #tpu.memory_space<vmem>>, vector<1x32xf32>,
    %192 = vector.extract_strided_slice %189 {offsets = [1, 0], sizes = [1, 32], strides = [1, 1]} : vector<2x32xf32> to vector<1x32xf32>
    %c15 = arith.constant 15 : index
    %c0_41 = arith.constant 0 : index
    %193 = vector.load %arg11[%c15, %c0_41] : memref<16x32xf32, #tpu.memory_space<vmem>>, vector<1x32xf32>
    tpu.vector_store %arg11[%c15, %c0_41], %192 {strides = array<i32>} : memref<16x32xf32, #tpu.memory_space<vmem>>, vector<1x32xf32>,
    %c0_42 = arith.constant 0 : index
    %c0_43 = arith.constant 0 : index
    %194 = vector.load %arg11[%c0_42, %c0_43] : memref<16x32xf32, #tpu.memory_space<vmem>>, vector<16x32xf32>
    %c0_44 = arith.constant 0 : index
    %c0_45 = arith.constant 0 : index
    %195 = vector.load %arg4[%c0_44, %c0_45] : memref<32x32xf32, #tpu.memory_space<vmem>>, vector<32x32xf32>
    %cst_46 = arith.constant dense<0.000000e+00> : vector<16x32xf32>
    %196 = tpu.matmul %194, %195, %cst_46 {dimension_numbers = #tpu.dot_dimension_numbers<[1], [0], [0], [1], [0, 0, 1, 1], [], []>} : vector<16x32xf32>, vector<32x32xf32>, vector<16x32xf32> -> vector<16x32xf32>
    %c0_47 = arith.constant 0 : index
    %c0_48 = arith.constant 0 : index
    %197 = vector.load %arg5[%c0_47, %c0_48] : memref<1x32xf32, #tpu.memory_space<vmem>>, vector<1x32xf32>
    %198 = vector.broadcast %197 : vector<1x32xf32> to vector<16x32xf32>
    %199 = arith.addf %196, %198 : vector<16x32xf32>
    %cst_49 = arith.constant 0.000000e+00 : f32
    %200 = vector.broadcast %cst_49 : f32 to vector<16x32xf32>
    %201 = arith.maximumf %199, %200 : vector<16x32xf32>
    %c0_50 = arith.constant 0 : index
    %c0_51 = arith.constant 0 : index
    %202 = vector.load %arg6[%c0_50, %c0_51] : memref<32x32xf32, #tpu.memory_space<vmem>>, vector<32x32xf32>
    %cst_52 = arith.constant dense<0.000000e+00> : vector<16x32xf32>
    %203 = tpu.matmul %201, %202, %cst_52 {dimension_numbers = #tpu.dot_dimension_numbers<[1], [0], [0], [1], [0, 0, 1, 1], [], []>} : vector<16x32xf32>, vector<32x32xf32>, vector<16x32xf32> -> vector<16x32xf32>
    %c0_53 = arith.constant 0 : index
    %c0_54 = arith.constant 0 : index
    %204 = vector.load %arg7[%c0_53, %c0_54] : memref<1x32xf32, #tpu.memory_space<vmem>>, vector<1x32xf32>
    %205 = vector.broadcast %204 : vector<1x32xf32> to vector<16x32xf32>
    %206 = arith.addf %203, %205 : vector<16x32xf32>
    %cst_55 = arith.constant 0.000000e+00 : f32
    %207 = vector.broadcast %cst_55 : f32 to vector<16x32xf32>
    %208 = arith.maximumf %206, %207 : vector<16x32xf32>
    %c0_56 = arith.constant 0 : index
    %c0_57 = arith.constant 0 : index
    %209 = vector.load %arg8[%c0_56, %c0_57] : memref<32x128xf32, #tpu.memory_space<vmem>>, vector<32x128xf32>
    %cst_58 = arith.constant dense<0.000000e+00> : vector<16x128xf32>
    %210 = tpu.matmul %208, %209, %cst_58 {dimension_numbers = #tpu.dot_dimension_numbers<[1], [0], [0], [1], [0, 0, 1, 1], [], []>} : vector<16x32xf32>, vector<32x128xf32>, vector<16x128xf32> -> vector<16x128xf32>
    %c0_59 = arith.constant 0 : index
    %c0_60 = arith.constant 0 : index
    %211 = vector.load %arg9[%c0_59, %c0_60] : memref<1x128xf32, #tpu.memory_space<vmem>>, vector<1x128xf32>
    %212 = vector.broadcast %211 : vector<1x128xf32> to vector<16x128xf32>
    %213 = arith.addf %210, %212 : vector<16x128xf32>
    %214 = tpu.iota {dimensions = array<i32: 1>} : vector<16x128xi32>
    %c8_i32 = arith.constant 8 : i32
    %215 = vector.broadcast %c8_i32 : i32 to vector<16x128xi32>
    %216 = arith.cmpi slt, %214, %215 : vector<16x128xi32>
    %cst_61 = arith.constant -1.000000e+30 : f32
    %217 = vector.broadcast %cst_61 : f32 to vector<16x128xf32>
    %218 = arith.select %216, %213, %217 : vector<16x128xi1>, vector<16x128xf32>
    %cst_62 = arith.constant dense<0xFF800000> : vector<16xf32>
    %219 = vector.multi_reduction <maximumf>, %218, %cst_62 [1] : vector<16x128xf32> to vector<16xf32>
    %220 = vector.shape_cast %219 : vector<16xf32> to vector<16x1xf32>
    %221 = vector.broadcast %220 : vector<16x1xf32> to vector<16x128xf32>
    %222 = arith.subf %218, %221 : vector<16x128xf32>
    %223 = math.exp %222 : vector<16x128xf32>
    %cst_63 = arith.constant 0.000000e+00 : f32
    %224 = vector.broadcast %cst_63 : f32 to vector<16x128xf32>
    %225 = arith.select %216, %223, %224 : vector<16x128xi1>, vector<16x128xf32>
    %cst_64 = arith.constant dense<0.000000e+00> : vector<16xf32>
    %226 = vector.multi_reduction <add>, %225, %cst_64 [1] : vector<16x128xf32> to vector<16xf32>
    %227 = vector.shape_cast %226 : vector<16xf32> to vector<16x1xf32>
    %228 = math.log %227 : vector<16x1xf32>
    %229 = vector.broadcast %220 : vector<16x1xf32> to vector<16x128xf32>
    %230 = arith.subf %218, %229 : vector<16x128xf32>
    %231 = vector.broadcast %228 : vector<16x1xf32> to vector<16x128xf32>
    %232 = arith.subf %230, %231 : vector<16x128xf32>
    %cst_65 = arith.constant 0.000000e+00 : f32
    %233 = vector.broadcast %cst_65 : f32 to vector<16x128xf32>
    %234 = arith.select %216, %232, %233 : vector<16x128xi1>, vector<16x128xf32>
    %c0_66 = arith.constant 0 : index
    %c0_67 = arith.constant 0 : index
    %235 = vector.load %arg10[%c0_66, %c0_67] : memref<16x128xf32, #tpu.memory_space<vmem>>, vector<16x128xf32>
    tpu.vector_store %arg10[%c0_66, %c0_67], %234 {strides = array<i32>} : memref<16x128xf32, #tpu.memory_space<vmem>>, vector<16x128xf32>,
    return
  }
}

</mosaic_0001>

<llo_original>
// kernel: tpu_custom_call.1
$region0: #{tpu_custom_call.1}
  #allocation0 [shape = 'u32[]', space=smem, size = 0x4, offset = 0x4, fixed_abs, tag = 'smem constant byte address 0x4 - core index']
  #allocation1 [shape = 'u32[144,128]{1,0:T(1,128)}', space=vmem, size = 0x12000, scoped, tag = 'internal scratch']
  #allocation2 [shape = 'f32[16,32]{1,0:T(8,128)}', space=vmem, size = 0x2000, scoped, tag = 'scratch operand']
  %s0 = inlined_call_operand.hbm [shape: f32[16,12], index: 0, kind: input, shape index: {}]
  %s1 = inlined_call_operand.hbm [shape: f32[12,128], index: 1, kind: input, shape index: {}]
  %s2 = inlined_call_operand.hbm [shape: f32[32,128], index: 2, kind: input, shape index: {}]
  %s3 = inlined_call_operand.vmem [shape: f32[1,128], index: 3, kind: input, shape index: {}]
  %s4 = inlined_call_operand.hbm [shape: f32[32,32], index: 4, kind: input, shape index: {}]
  %s5 = inlined_call_operand.vmem [shape: f32[1,32], index: 5, kind: input, shape index: {}]
  %s6 = inlined_call_operand.hbm [shape: f32[32,32], index: 6, kind: input, shape index: {}]
  %s7 = inlined_call_operand.vmem [shape: f32[1,32], index: 7, kind: input, shape index: {}]
  %s8 = inlined_call_operand.hbm [shape: f32[32,128], index: 8, kind: input, shape index: {}]
  %s9 = inlined_call_operand.vmem [shape: f32[1,128], index: 9, kind: input, shape index: {}]
  %s10 = inlined_call_operand.hbm [shape: f32[16,128], index: 10, kind: output, shape index: {}]
  %s11 = sld [smem:[#allocation0]]
  $region74: #{tpu_custom_call.1} parent=0
    _
  %s13 = ssub.s32 1, %s11
  %s14 = scalar_select 0, %s13, %s11
  $region1: #{tpu_custom_call.1} parent=0
    #allocation3 [shape = 'u8[8192]{0}', space=vmem, size = 0x2000, scoped, tag = 'input window, operand 0, single buffered']
    #allocation4 [shape = 's32[1]{0}', space=sflag, size = 0x4, scoped, tag = 'scoped memory for tpu_custom_call.1']
    #allocation5 [shape = 's32[1]{0}', space=sflag, size = 0x4, scoped, tag = 'scoped memory for tpu_custom_call.1']
    #allocation6 [shape = 'u8[8192]{0}', space=vmem, size = 0x2000, scoped, tag = 'input window, operand 1, single buffered']
    #allocation7 [shape = 's32[1]{0}', space=sflag, size = 0x4, scoped, tag = 'scoped memory for tpu_custom_call.1']
    #allocation8 [shape = 'u8[16384]{0}', space=vmem, size = 0x4000, scoped, tag = 'input window, operand 2, single buffered']
    #allocation9 [shape = 'u8[16384]{0}', space=vmem, size = 0x4000, scoped, tag = 'input window, operand 4, single buffered']
    #allocation10 [shape = 's32[1]{0}', space=sflag, size = 0x4, scoped, tag = 'scoped memory for tpu_custom_call.1']
    #allocation11 [shape = 'u8[16384]{0}', space=vmem, size = 0x4000, scoped, tag = 'input window, operand 6, single buffered']
    #allocation12 [shape = 'u8[16384]{0}', space=vmem, size = 0x4000, scoped, tag = 'input window, operand 8, single buffered']
    #allocation13 [shape = 's32[1]{0}', space=sflag, size = 0x4, scoped, tag = 'scoped memory for tpu_custom_call.1']
    #allocation14 [shape = 'u8[8192]{0}', space=vmem, size = 0x2000, scoped, tag = 'output window, operand 0, single buffered']
    %15 = vsyncpa [#allocation4], 0
    %16 = vsyncpa [#allocation7], 0
    %17 = vsyncpa [#allocation10], 0
    %18 = vsyncpa [#allocation13], 0
    %19 = vsyncpa [#allocation5], 0
    // Predicated region
    $region2: #{tpu_custom_call.1} parent=1 // pred_check
      _
    $region3: #{tpu_custom_call.1} parent=1 // pred_check_branch
      %21 = sbr.rel (0) target = $region5
    $region4: #{tpu_custom_call.1} parent=1 // pred_region
      %s23 = ssub.s32 256, 256
      %24 = vsyncadd [#allocation4], %s23
      %s25 = sshll.u32 [#allocation3], 4
      %s26 = int_to_ptr.vmem [resolvable:$true] %s25
      %31 = dma.hbm_to_vmem [thread:$0]  %s0, 256, %s26, [#allocation4], 128, 128, 8
    $region5: #{tpu_custom_call.1} parent=1 // pred_fallthru
      _
    // Predicated region
    $region6: #{tpu_custom_call.1} parent=1 // pred_check
      _
    $region7: #{tpu_custom_call.1} parent=1 // pred_check_branch
      %33 = sbr.rel (0) target = $region9
    $region8: #{tpu_custom_call.1} parent=1 // pred_region
      %s35 = ssub.s32 256, 256
      %36 = vsyncadd [#allocation7], %s35
      %s37 = sshll.u32 [#allocation6], 4
      %s38 = int_to_ptr.vmem [resolvable:$true] %s37
      %43 = dma.hbm_to_vmem [thread:$0]  %s1, 256, %s38, [#allocation7], 128, 128, 8
    $region9: #{tpu_custom_call.1} parent=1 // pred_fallthru
      _
    // Predicated region
    $region10: #{tpu_custom_call.1} parent=1 // pred_check
      _
    $region11: #{tpu_custom_call.1} parent=1 // pred_check_branch
      %45 = sbr.rel (0) target = $region13
    $region12: #{tpu_custom_call.1} parent=1 // pred_region
      %s47 = ssub.s32 512, 512
      %48 = vsyncadd [#allocation7], %s47
      %s49 = sshll.u32 [#allocation8], 4
      %s50 = int_to_ptr.vmem [resolvable:$true] %s49
      %55 = dma.hbm_to_vmem [thread:$0]  %s2, 512, %s50, [#allocation7], 128, 128, 8
    $region13: #{tpu_custom_call.1} parent=1 // pred_fallthru
      _
    // Predicated region
    $region14: #{tpu_custom_call.1} parent=1 // pred_check
      _
    $region15: #{tpu_custom_call.1} parent=1 // pred_check_branch
      %57 = sbr.rel (0) target = $region17
    $region16: #{tpu_custom_call.1} parent=1 // pred_region
      _
    $region17: #{tpu_custom_call.1} parent=1 // pred_fallthru
      _
    // Predicated region
    $region18: #{tpu_custom_call.1} parent=1 // pred_check
      _
    $region19: #{tpu_custom_call.1} parent=1 // pred_check_branch
      %59 = sbr.rel (0) target = $region21
    $region20: #{tpu_custom_call.1} parent=1 // pred_region
      %s61 = ssub.s32 512, 512
      %62 = vsyncadd [#allocation10], %s61
      %s63 = sshll.u32 [#allocation9], 4
      %s64 = int_to_ptr.vmem [resolvable:$true] %s63
      %69 = dma.hbm_to_vmem [thread:$0]  %s4, 512, %s64, [#allocation10], 128, 128, 8
    $region21: #{tpu_custom_call.1} parent=1 // pred_fallthru
      _
    // Predicated region
    $region22: #{tpu_custom_call.1} parent=1 // pred_check
      _
    $region23: #{tpu_custom_call.1} parent=1 // pred_check_branch
      %71 = sbr.rel (0) target = $region25
    $region24: #{tpu_custom_call.1} parent=1 // pred_region
      _
    $region25: #{tpu_custom_call.1} parent=1 // pred_fallthru
      _
    // Predicated region
    $region26: #{tpu_custom_call.1} parent=1 // pred_check
      _
    $region27: #{tpu_custom_call.1} parent=1 // pred_check_branch
      %73 = sbr.rel (0) target = $region29
    $region28: #{tpu_custom_call.1} parent=1 // pred_region
      %s75 = ssub.s32 512, 512
      %76 = vsyncadd [#allocation10], %s75
      %s77 = sshll.u32 [#allocation11], 4
      %s78 = int_to_ptr.vmem [resolvable:$true] %s77
      %83 = dma.hbm_to_vmem [thread:$0]  %s6, 512, %s78, [#allocation10], 128, 128, 8
    $region29: #{tpu_custom_call.1} parent=1 // pred_fallthru
      _
    // Predicated region
    $region30: #{tpu_custom_call.1} parent=1 // pred_check
      _
    $region31: #{tpu_custom_call.1} parent=1 // pred_check_branch
      %85 = sbr.rel (0) target = $region33
    $region32: #{tpu_custom_call.1} parent=1 // pred_region
      _
    $region33: #{tpu_custom_call.1} parent=1 // pred_fallthru
      _
    // Predicated region
    $region34: #{tpu_custom_call.1} parent=1 // pred_check
      _
    $region35: #{tpu_custom_call.1} parent=1 // pred_check_branch
      %87 = sbr.rel (0) target = $region37
    $region36: #{tpu_custom_call.1} parent=1 // pred_region
      %s89 = ssub.s32 512, 512
      %90 = vsyncadd [#allocation13], %s89
      %s91 = sshll.u32 [#allocation12], 4
      %s92 = int_to_ptr.vmem [resolvable:$true] %s91
      %97 = dma.hbm_to_vmem [thread:$0]  %s8, 512, %s92, [#allocation13], 128, 128, 8
    $region37: #{tpu_custom_call.1} parent=1 // pred_fallthru
      _
    // Predicated region
    $region38: #{tpu_custom_call.1} parent=1 // pred_check
      _
    $region39: #{tpu_custom_call.1} parent=1 // pred_check_branch
      %99 = sbr.rel (0) target = $region41
    $region40: #{tpu_custom_call.1} parent=1 // pred_region
      _
    $region41: #{tpu_custom_call.1} parent=1 // pred_fallthru
      _
    // Predicated region
    $region42: #{tpu_custom_call.1} parent=1 // pred_check
      _
    $region43: #{tpu_custom_call.1} parent=1 // pred_check_branch
      %101 = sbr.rel (0) target = $region45
    $region44: #{tpu_custom_call.1} parent=1 // pred_region
      %102 = dma.done [#allocation4], 256
    $region45: #{tpu_custom_call.1} parent=1 // pred_fallthru
      _
    // Predicated region
    $region46: #{tpu_custom_call.1} parent=1 // pred_check
      _
    $region47: #{tpu_custom_call.1} parent=1 // pred_check_branch
      %104 = sbr.rel (0) target = $region49
    $region48: #{tpu_custom_call.1} parent=1 // pred_region
      %105 = dma.done [#allocation7], 256
    $region49: #{tpu_custom_call.1} parent=1 // pred_fallthru
      _
    // Predicated region
    $region50: #{tpu_custom_call.1} parent=1 // pred_check
      _
    $region51: #{tpu_custom_call.1} parent=1 // pred_check_branch
      %107 = sbr.rel (0) target = $region53
    $region52: #{tpu_custom_call.1} parent=1 // pred_region
      %108 = dma.done [#allocation7], 512
    $region53: #{tpu_custom_call.1} parent=1 // pred_fallthru
      _
    // Predicated region
    $region54: #{tpu_custom_call.1} parent=1 // pred_check
      _
    $region55: #{tpu_custom_call.1} parent=1 // pred_check_branch
      %110 = sbr.rel (0) target = $region57
    $region56: #{tpu_custom_call.1} parent=1 // pred_region
      %111 = dma.done [#allocation10], 512
    $region57: #{tpu_custom_call.1} parent=1 // pred_fallthru
      _
    // Predicated region
    $region58: #{tpu_custom_call.1} parent=1 // pred_check
      _
    $region59: #{tpu_custom_call.1} parent=1 // pred_check_branch
      %113 = sbr.rel (0) target = $region61
    $region60: #{tpu_custom_call.1} parent=1 // pred_region
      %114 = dma.done [#allocation10], 512
    $region61: #{tpu_custom_call.1} parent=1 // pred_fallthru
      _
    // Predicated region
    $region62: #{tpu_custom_call.1} parent=1 // pred_check
      _
    $region63: #{tpu_custom_call.1} parent=1 // pred_check_branch
      %116 = sbr.rel (0) target = $region65
    $region64: #{tpu_custom_call.1} parent=1 // pred_region
      %117 = dma.done [#allocation13], 512
    $region65: #{tpu_custom_call.1} parent=1 // pred_fallthru
      _
    %v118 = vld [vmem:[#allocation3] sm:$0xff]
    %v119 = vld [vmem:[#allocation3 + $0x8] sm:$0xff]
    %v120 = vld [vmem:[#allocation6] sm:$0xff]
    %v121 = vld [vmem:[#allocation6 + $0x8] sm:$0xf]
    %v122 = vld [vmem:[%s3] sm:$0x1]
    %v124 = vlaneseq
    %v125 = vshrl.u32 %v124, 7
    %v126 = vsub.s32 0, %v125
    %v127 = vrot.slane %v122, %v126
    %vm129 = vcmask 97280
    %v131 = vsel %vm129, %v118, 0
    %v134 = vsel %vm129, %v119, 0
    %vm136 = vcmask 1043456
    %v138 = vsel %vm136, %v121, 0
    %140 = vmatprep.subr.mxu0 0.0
    %141 = vmatpush1.msra.mxu0 0.0
    %142 = vmatprep.subr.mxu0 0.0
    %143 = vmatpush1.msra.mxu0 0.0
    %144 = vmatprep.subr.mxu0 0.0
    %145 = vmatpush1.msra.mxu0 0.0
    %146 = vmatprep.subr.mxu0 0.0
    %147 = vmatpush1.msra.mxu0 0.0
    %148 = vmatprep.subr.mxu0 0.0
    %149 = vmatpush1.msra.mxu0 0.0
    %150 = vmatprep.subr.mxu0 0.0
    %151 = vmatpush1.msra.mxu0 0.0
    %152 = vmatprep.subr.mxu0 0.0
    %153 = vmatpush1.msra.mxu0 0.0
    %154 = vmatprep.subr.mxu0 0.0
    %155 = vmatpush1.msra.mxu0 0.0
    %156 = vmatprep.subr.mxu0 0.0
    %157 = vmatpush1.msra.mxu0 0.0
    %158 = vmatprep.subr.mxu0 0.0
    %159 = vmatpush1.msra.mxu0 0.0
    %160 = vmatprep.subr.mxu0 0.0
    %161 = vmatpush1.msra.mxu0 0.0
    %162 = vmatprep.subr.mxu0 0.0
    %163 = vmatpush1.msra.mxu0 0.0
    %164 = vmatprep.subr.mxu0 0.0
    %165 = vmatpush1.msra.mxu0 0.0
    %166 = vmatprep.subr.mxu0 0.0
    %167 = vmatpush1.msra.mxu0 0.0
    %168 = vmatprep.subr.mxu0 0.0
    %169 = vmatpush1.msra.mxu0 %v138
    %170 = vmatprep.subr.mxu0 0.0
    %171 = vmatpush1.msra.mxu0 %v120
    %172 = vmatprep.subr.mxu0 0.0
    %173 = vmatpush2.msra.mxu0 0.0
    %174 = vmatprep.subr.mxu0 0.0
    %175 = vmatpush2.msra.mxu0 0.0
    %176 = vmatprep.subr.mxu0 0.0
    %177 = vmatpush2.msra.mxu0 0.0
    %178 = vmatprep.subr.mxu0 0.0
    %179 = vmatpush2.msra.mxu0 0.0
    %180 = vmatprep.subr.mxu0 0.0
    %181 = vmatpush2.msra.mxu0 0.0
    %182 = vmatprep.subr.mxu0 0.0
    %183 = vmatpush2.msra.mxu0 0.0
    %184 = vmatprep.subr.mxu0 0.0
    %185 = vmatpush2.msra.mxu0 0.0
    %186 = vmatprep.subr.mxu0 0.0
    %187 = vmatpush2.msra.mxu0 0.0
    %188 = vmatprep.subr.mxu0 0.0
    %189 = vmatpush2.msra.mxu0 0.0
    %190 = vmatprep.subr.mxu0 0.0
    %191 = vmatpush2.msra.mxu0 0.0
    %192 = vmatprep.subr.mxu0 0.0
    %193 = vmatpush2.msra.mxu0 0.0
    %194 = vmatprep.subr.mxu0 0.0
    %195 = vmatpush2.msra.mxu0 0.0
    %196 = vmatprep.subr.mxu0 0.0
    %197 = vmatpush2.msra.mxu0 0.0
    %198 = vmatprep.subr.mxu0 0.0
    %199 = vmatpush2.msra.mxu0 0.0
    %200 = vmatprep.subr.mxu0 0.0
    %201 = vmatpush2.msra.mxu0 0.0
    %202 = vmatprep.subr.mxu0 0.0
    %203 = vmatpush2.msra.mxu0 0.0
    %204 = vmatprep.mubr.f32.mxu0 0.0
    %205 = vmatmul.mubr.f32.gmra.mxu0 %v131
    %v206 = vpop.f32.mrf.mxu0
    %v207 = vadd.f32 %v127, %v206
    %v208 = vpop.f32.mrf.mxu0
    %209 = vmatprep.mubr.f32.mxu0 0.0
    %210 = vmatmul.mubr.f32.gmra.mxu0 %v134
    %v211 = vpop.f32.mrf.mxu0
    %v212 = vadd.f32 %v127, %v211
    %v213 = vpop.f32.mrf.mxu0
    %214 = vdwg.mxu0
    %v215 = vld [vmem:[#allocation8] sm:$0xff]
    %v216 = vld [vmem:[#allocation8 + $0x8] sm:$0xff]
    %v217 = vld [vmem:[#allocation8 + $0x10] sm:$0xff]
    %v218 = vld [vmem:[#allocation8 + $0x18] sm:$0xff]
    %vm219 = vcmask 261120
    %v221 = vsel %vm219, 0.0, 0
    %223 = vmatprep.subr.mxu0 0.0
    %224 = vmatpush1.msra.mxu0 0.0
    %225 = vmatprep.subr.mxu0 0.0
    %226 = vmatpush1.msra.mxu0 0.0
    %227 = vmatprep.subr.mxu0 0.0
    %228 = vmatpush1.msra.mxu0 0.0
    %229 = vmatprep.subr.mxu0 0.0
    %230 = vmatpush1.msra.mxu0 0.0
    %231 = vmatprep.subr.mxu0 0.0
    %232 = vmatpush1.msra.mxu0 0.0
    %233 = vmatprep.subr.mxu0 0.0
    %234 = vmatpush1.msra.mxu0 0.0
    %235 = vmatprep.subr.mxu0 0.0
    %236 = vmatpush1.msra.mxu0 0.0
    %237 = vmatprep.subr.mxu0 0.0
    %238 = vmatpush1.msra.mxu0 0.0
    %239 = vmatprep.subr.mxu0 0.0
    %240 = vmatpush1.msra.mxu0 0.0
    %241 = vmatprep.subr.mxu0 0.0
    %242 = vmatpush1.msra.mxu0 0.0
    %243 = vmatprep.subr.mxu0 0.0
    %244 = vmatpush1.msra.mxu0 0.0
    %245 = vmatprep.subr.mxu0 0.0
    %246 = vmatpush1.msra.mxu0 0.0
    %247 = vmatprep.subr.mxu0 0.0
    %248 = vmatpush1.msra.mxu0 %v218
    %249 = vmatprep.subr.mxu0 0.0
    %250 = vmatpush1.msra.mxu0 %v217
    %251 = vmatprep.subr.mxu0 0.0
    %252 = vmatpush1.msra.mxu0 %v216
    %253 = vmatprep.subr.mxu0 0.0
    %254 = vmatpush1.msra.mxu0 %v215
    %255 = vmatprep.subr.mxu0 0.0
    %256 = vmatpush2.msra.mxu0 0.0
    %257 = vmatprep.subr.mxu0 0.0
    %258 = vmatpush2.msra.mxu0 0.0
    %259 = vmatprep.subr.mxu0 0.0
    %260 = vmatpush2.msra.mxu0 0.0
    %261 = vmatprep.subr.mxu0 0.0
    %262 = vmatpush2.msra.mxu0 0.0
    %263 = vmatprep.subr.mxu0 0.0
    %264 = vmatpush2.msra.mxu0 0.0
    %265 = vmatprep.subr.mxu0 0.0
    %266 = vmatpush2.msra.mxu0 0.0
    %267 = vmatprep.subr.mxu0 0.0
    %268 = vmatpush2.msra.mxu0 0.0
    %269 = vmatprep.subr.mxu0 0.0
    %270 = vmatpush2.msra.mxu0 0.0
    %271 = vmatprep.subr.mxu0 0.0
    %272 = vmatpush2.msra.mxu0 0.0
    %273 = vmatprep.subr.mxu0 0.0
    %274 = vmatpush2.msra.mxu0 0.0
    %275 = vmatprep.subr.mxu0 0.0
    %276 = vmatpush2.msra.mxu0 0.0
    %277 = vmatprep.subr.mxu0 0.0
    %278 = vmatpush2.msra.mxu0 0.0
    %279 = vmatprep.subr.mxu0 0.0
    %280 = vmatpush2.msra.mxu0 0.0
    %281 = vmatprep.subr.mxu0 0.0
    %282 = vmatpush2.msra.mxu0 0.0
    %283 = vmatprep.subr.mxu0 0.0
    %284 = vmatpush2.msra.mxu0 0.0
    %285 = vmatprep.subr.mxu0 0.0
    %286 = vmatpush2.msra.mxu0 0.0
    %287 = vmatprep.mubr.f32.mxu0 0.0
    %288 = vmatmul.mubr.f32.gmra.mxu0 %v221
    %v289 = vpop.f32.mrf.mxu0
    %v290 = vadd.f32 0.0, %v289
    %v291 = vpop.f32.mrf.mxu0
    %292 = vdwg.mxu0
    %v294 = vrot.slane %v290, 1
    %v297 = vadd.f32 %v207, %v290
    %v298 = vadd.f32 %v212, %v294
    %v299 = vxor.u32 %v297, 2147483648
    %v300 = vxor.u32 %v298, 2147483648
    %v301 = vmul.f32 %v299, 1.442695
    %v302 = vpow.pop %v301
    %v303 = vmul.f32 %v300, 1.442695
    %v304 = vpow.pop %v303
    %v305 = vadd.f32 %v302, 1.0
    %v306 = vadd.f32 %v304, 1.0
    %v307 = vrcp.pop %v305
    %v308 = vmul.f32 1.0, %v307
    %v309 = vrcp.pop %v306
    %v310 = vmul.f32 1.0, %v309
    %v311 = vtanh.pop %v297
    %v312 = vtanh.pop %v298
    %v313 = vmul.f32 %v308, 0.0
    %v314 = vmul.f32 %v310, 0.0
    %317 = vrot.lane.b32.xlu0 %v311, 64
    %v318 = vpop.permute.xlu0 %317
    %319 = vrot.lane.b32.xlu0 %v312, 64
    %v320 = vpop.permute.xlu0 %319
    %v323 = vmul.f32 %v308, %v318
    %v324 = vmul.f32 %v310, %v320
    %327 = vrot.lane.b32.xlu0 %v323, 32
    %v328 = vpop.permute.xlu0 %327
    %329 = vrot.lane.b32.xlu0 %v324, 32
    %v330 = vpop.permute.xlu0 %329
    %v333 = vadd.f32 %v313, %v328
    %v334 = vadd.f32 %v314, %v330
    %v335 = vtanh.pop %v333
    %v336 = vtanh.pop %v334
    %339 = vrot.lane.b32.xlu0 %v335, 64
    %v340 = vpop.permute.xlu0 %339
    %341 = vrot.lane.b32.xlu0 %v336, 64
    %v342 = vpop.permute.xlu0 %341
    %v345 = vmul.f32 %v308, %v340
    %v346 = vmul.f32 %v310, %v342
    %348 = vrot.lane.b32.xlu0 %v345, 32
    %v349 = vpop.permute.xlu0 %348
    %vm351 = vcmask 253952
    %352 = vst.msk [vmem:[#allocation2] sm:$0x1] %vm351, %v349
    %354 = vrot.lane.b32.xlu0 %v346, 32
    %v355 = vpop.permute.xlu0 %354
    %357 = vst.msk [vmem:[#allocation2 + $0x8] sm:$0x1] %vm351, %v355
    %v358 = vrot.slane %v346, 7
    %vm359 = vcmask 1041409
    %v360 = vsel %vm359, %v358, %v345
    %361 = vrot.lane.b32.xlu0 %v360, 32
    %v362 = vpop.permute.xlu0 %361
    %v363 = vsel %vm219, %v362, 0
    %365 = vmatprep.subr.mxu0 0.0
    %366 = vmatpush1.msra.mxu0 0.0
    %367 = vmatprep.subr.mxu0 0.0
    %368 = vmatpush1.msra.mxu0 0.0
    %369 = vmatprep.subr.mxu0 0.0
    %370 = vmatpush1.msra.mxu0 0.0
    %371 = vmatprep.subr.mxu0 0.0
    %372 = vmatpush1.msra.mxu0 0.0
    %373 = vmatprep.subr.mxu0 0.0
    %374 = vmatpush1.msra.mxu0 0.0
    %375 = vmatprep.subr.mxu0 0.0
    %376 = vmatpush1.msra.mxu0 0.0
    %377 = vmatprep.subr.mxu0 0.0
    %378 = vmatpush1.msra.mxu0 0.0
    %379 = vmatprep.subr.mxu0 0.0
    %380 = vmatpush1.msra.mxu0 0.0
    %381 = vmatprep.subr.mxu0 0.0
    %382 = vmatpush1.msra.mxu0 0.0
    %383 = vmatprep.subr.mxu0 0.0
    %384 = vmatpush1.msra.mxu0 0.0
    %385 = vmatprep.subr.mxu0 0.0
    %386 = vmatpush1.msra.mxu0 0.0
    %387 = vmatprep.subr.mxu0 0.0
    %388 = vmatpush1.msra.mxu0 0.0
    %389 = vmatprep.subr.mxu0 0.0
    %390 = vmatpush1.msra.mxu0 %v218
    %391 = vmatprep.subr.mxu0 0.0
    %392 = vmatpush1.msra.mxu0 %v217
    %393 = vmatprep.subr.mxu0 0.0
    %394 = vmatpush1.msra.mxu0 %v216
    %395 = vmatprep.subr.mxu0 0.0
    %396 = vmatpush1.msra.mxu0 %v215
    %397 = vmatprep.subr.mxu0 0.0
    %398 = vmatpush2.msra.mxu0 0.0
    %399 = vmatprep.subr.mxu0 0.0
    %400 = vmatpush2.msra.mxu0 0.0
    %401 = vmatprep.subr.mxu0 0.0
    %402 = vmatpush2.msra.mxu0 0.0
    %403 = vmatprep.subr.mxu0 0.0
    %404 = vmatpush2.msra.mxu0 0.0
    %405 = vmatprep.subr.mxu0 0.0
    %406 = vmatpush2.msra.mxu0 0.0
    %407 = vmatprep.subr.mxu0 0.0
    %408 = vmatpush2.msra.mxu0 0.0
    %409 = vmatprep.subr.mxu0 0.0
    %410 = vmatpush2.msra.mxu0 0.0
    %411 = vmatprep.subr.mxu0 0.0
    %412 = vmatpush2.msra.mxu0 0.0
    %413 = vmatprep.subr.mxu0 0.0
    %414 = vmatpush2.msra.mxu0 0.0
    %415 = vmatprep.subr.mxu0 0.0
    %416 = vmatpush2.msra.mxu0 0.0
    %417 = vmatprep.subr.mxu0 0.0
    %418 = vmatpush2.msra.mxu0 0.0
    %419 = vmatprep.subr.mxu0 0.0
    %420 = vmatpush2.msra.mxu0 0.0
    %421 = vmatprep.subr.mxu0 0.0
    %422 = vmatpush2.msra.mxu0 0.0
    %423 = vmatprep.subr.mxu0 0.0
    %424 = vmatpush2.msra.mxu0 0.0
    %425 = vmatprep.subr.mxu0 0.0
    %426 = vmatpush2.msra.mxu0 0.0
    %427 = vmatprep.subr.mxu0 0.0
    %428 = vmatpush2.msra.mxu0 0.0
    %429 = vmatprep.mubr.f32.mxu0 0.0
    %430 = vmatmul.mubr.f32.gmra.mxu0 %v363
    %v431 = vpop.f32.mrf.mxu0
    %v432 = vadd.f32 0.0, %v431
    %v433 = vpop.f32.mrf.mxu0
    %434 = vdwg.mxu0
    %v436 = vrot.slane %v432, 7
    %v439 = vadd.f32 %v207, %v436
    %v440 = vadd.f32 %v212, %v432
    %v441 = vxor.u32 %v439, 2147483648
    %v442 = vxor.u32 %v440, 2147483648
    %v443 = vmul.f32 %v441, 1.442695
    %v444 = vpow.pop %v443
    %v445 = vmul.f32 %v442, 1.442695
    %v446 = vpow.pop %v445
    %v447 = vadd.f32 %v444, 1.0
    %v448 = vadd.f32 %v446, 1.0
    %v449 = vrcp.pop %v447
    %v450 = vmul.f32 1.0, %v449
    %v451 = vrcp.pop %v448
    %v452 = vmul.f32 1.0, %v451
    %v453 = vtanh.pop %v439
    %v454 = vtanh.pop %v440
    %v457 = vrot.slane %v333, 7
    %v458 = vrot.slane %v334, 7
    %v461 = vmul.f32 %v450, %v457
    %v462 = vmul.f32 %v452, %v458
    %465 = vrot.lane.b32.xlu0 %v453, 64
    %v466 = vpop.permute.xlu0 %465
    %467 = vrot.lane.b32.xlu0 %v454, 64
    %v468 = vpop.permute.xlu0 %467
    %v471 = vmul.f32 %v450, %v466
    %v472 = vmul.f32 %v452, %v468
    %475 = vrot.lane.b32.xlu0 %v471, 32
    %v476 = vpop.permute.xlu0 %475
    %477 = vrot.lane.b32.xlu0 %v472, 32
    %v478 = vpop.permute.xlu0 %477
    %v481 = vadd.f32 %v461, %v476
    %v482 = vadd.f32 %v462, %v478
    %v483 = vtanh.pop %v481
    %v484 = vtanh.pop %v482
    %487 = vrot.lane.b32.xlu0 %v483, 64
    %v488 = vpop.permute.xlu0 %487
    %489 = vrot.lane.b32.xlu0 %v484, 64
    %v490 = vpop.permute.xlu0 %489
    %v493 = vmul.f32 %v450, %v488
    %v494 = vmul.f32 %v452, %v490
    %496 = vrot.lane.b32.xlu0 %v493, 32
    %v497 = vpop.permute.xlu0 %496
    %vm499 = vcmask 254977
    %500 = vst.msk [vmem:[#allocation2] sm:$0x2] %vm499, %v497
    %502 = vrot.lane.b32.xlu0 %v494, 32
    %v503 = vpop.permute.xlu0 %502
    %505 = vst.msk [vmem:[#allocation2 + $0x8] sm:$0x2] %vm499, %v503
    %v506 = vrot.slane %v493, 1
    %v507 = vsel %vm359, %v494, %v506
    %508 = vrot.lane.b32.xlu0 %v507, 32
    %v509 = vpop.permute.xlu0 %508
    %v510 = vsel %vm219, %v509, 0
    %512 = vmatprep.subr.mxu0 0.0
    %513 = vmatpush1.msra.mxu0 0.0
    %514 = vmatprep.subr.mxu0 0.0
    %515 = vmatpush1.msra.mxu0 0.0
    %516 = vmatprep.subr.mxu0 0.0
    %517 = vmatpush1.msra.mxu0 0.0
    %518 = vmatprep.subr.mxu0 0.0
    %519 = vmatpush1.msra.mxu0 0.0
    %520 = vmatprep.subr.mxu0 0.0
    %521 = vmatpush1.msra.mxu0 0.0
    %522 = vmatprep.subr.mxu0 0.0
    %523 = vmatpush1.msra.mxu0 0.0
    %524 = vmatprep.subr.mxu0 0.0
    %525 = vmatpush1.msra.mxu0 0.0
    %526 = vmatprep.subr.mxu0 0.0
    %527 = vmatpush1.msra.mxu0 0.0
    %528 = vmatprep.subr.mxu0 0.0
    %529 = vmatpush1.msra.mxu0 0.0
    %530 = vmatprep.subr.mxu0 0.0
    %531 = vmatpush1.msra.mxu0 0.0
    %532 = vmatprep.subr.mxu0 0.0
    %533 = vmatpush1.msra.mxu0 0.0
    %534 = vmatprep.subr.mxu0 0.0
    %535 = vmatpush1.msra.mxu0 0.0
    %536 = vmatprep.subr.mxu0 0.0
    %537 = vmatpush1.msra.mxu0 %v218
    %538 = vmatprep.subr.mxu0 0.0
    %539 = vmatpush1.msra.mxu0 %v217
    %540 = vmatprep.subr.mxu0 0.0
    %541 = vmatpush1.msra.mxu0 %v216
    %542 = vmatprep.subr.mxu0 0.0
    %543 = vmatpush1.msra.mxu0 %v215
    %544 = vmatprep.subr.mxu0 0.0
    %545 = vmatpush2.msra.mxu0 0.0
    %546 = vmatprep.subr.mxu0 0.0
    %547 = vmatpush2.msra.mxu0 0.0
    %548 = vmatprep.subr.mxu0 0.0
    %549 = vmatpush2.msra.mxu0 0.0
    %550 = vmatprep.subr.mxu0 0.0
    %551 = vmatpush2.msra.mxu0 0.0
    %552 = vmatprep.subr.mxu0 0.0
    %553 = vmatpush2.msra.mxu0 0.0
    %554 = vmatprep.subr.mxu0 0.0
    %555 = vmatpush2.msra.mxu0 0.0
    %556 = vmatprep.subr.mxu0 0.0
    %557 = vmatpush2.msra.mxu0 0.0
    %558 = vmatprep.subr.mxu0 0.0
    %559 = vmatpush2.msra.mxu0 0.0
    %560 = vmatprep.subr.mxu0 0.0
    %561 = vmatpush2.msra.mxu0 0.0
    %562 = vmatprep.subr.mxu0 0.0
    %563 = vmatpush2.msra.mxu0 0.0
    %564 = vmatprep.subr.mxu0 0.0
    %565 = vmatpush2.msra.mxu0 0.0
    %566 = vmatprep.subr.mxu0 0.0
    %567 = vmatpush2.msra.mxu0 0.0
    %568 = vmatprep.subr.mxu0 0.0
    %569 = vmatpush2.msra.mxu0 0.0
    %570 = vmatprep.subr.mxu0 0.0
    %571 = vmatpush2.msra.mxu0 0.0
    %572 = vmatprep.subr.mxu0 0.0
    %573 = vmatpush2.msra.mxu0 0.0
    %574 = vmatprep.subr.mxu0 0.0
    %575 = vmatpush2.msra.mxu0 0.0
    %576 = vmatprep.mubr.f32.mxu0 0.0
    %577 = vmatmul.mubr.f32.gmra.mxu0 %v510
    %v578 = vpop.f32.mrf.mxu0
    %v579 = vadd.f32 0.0, %v578
    %v580 = vpop.f32.mrf.mxu0
    %581 = vdwg.mxu0
    %v583 = vrot.slane %v579, 6
    %v584 = vrot.slane %v579, 7
    %v587 = vadd.f32 %v207, %v583
    %v588 = vadd.f32 %v212, %v584
    %v589 = vxor.u32 %v587, 2147483648
    %v590 = vxor.u32 %v588, 2147483648
    %v591 = vmul.f32 %v589, 1.442695
    %v592 = vpow.pop %v591
    %v593 = vmul.f32 %v590, 1.442695
    %v594 = vpow.pop %v593
    %v595 = vadd.f32 %v592, 1.0
    %v596 = vadd.f32 %v594, 1.0
    %v597 = vrcp.pop %v595
    %v598 = vmul.f32 1.0, %v597
    %v599 = vrcp.pop %v596
    %v600 = vmul.f32 1.0, %v599
    %v601 = vtanh.pop %v587
    %v602 = vtanh.pop %v588
    %v605 = vrot.slane %v481, 7
    %v606 = vrot.slane %v482, 7
    %v609 = vmul.f32 %v598, %v605
    %v610 = vmul.f32 %v600, %v606
    %613 = vrot.lane.b32.xlu0 %v601, 64
    %v614 = vpop.permute.xlu0 %613
    %615 = vrot.lane.b32.xlu0 %v602, 64
    %v616 = vpop.permute.xlu0 %615
    %v619 = vmul.f32 %v598, %v614
    %v620 = vmul.f32 %v600, %v616
    %623 = vrot.lane.b32.xlu0 %v619, 32
    %v624 = vpop.permute.xlu0 %623
    %625 = vrot.lane.b32.xlu0 %v620, 32
    %v626 = vpop.permute.xlu0 %625
    %v629 = vadd.f32 %v609, %v624
    %v630 = vadd.f32 %v610, %v626
    %v631 = vtanh.pop %v629
    %v632 = vtanh.pop %v630
    %635 = vrot.lane.b32.xlu0 %v631, 64
    %v636 = vpop.permute.xlu0 %635
    %637 = vrot.lane.b32.xlu0 %v632, 64
    %v638 = vpop.permute.xlu0 %637
    %v641 = vmul.f32 %v598, %v636
    %v642 = vmul.f32 %v600, %v638
    %644 = vrot.lane.b32.xlu0 %v641, 32
    %v645 = vpop.permute.xlu0 %644
    %vm647 = vcmask 256002
    %648 = vst.msk [vmem:[#allocation2] sm:$0x4] %vm647, %v645
    %650 = vrot.lane.b32.xlu0 %v642, 32
    %v651 = vpop.permute.xlu0 %650
    %653 = vst.msk [vmem:[#allocation2 + $0x8] sm:$0x4] %vm647, %v651
    %v654 = vrot.slane %v641, 2
    %v655 = vrot.slane %v642, 1
    %v656 = vsel %vm359, %v655, %v654
    %657 = vrot.lane.b32.xlu0 %v656, 32
    %v658 = vpop.permute.xlu0 %657
    %v659 = vsel %vm219, %v658, 0
    %661 = vmatprep.subr.mxu0 0.0
    %662 = vmatpush1.msra.mxu0 0.0
    %663 = vmatprep.subr.mxu0 0.0
    %664 = vmatpush1.msra.mxu0 0.0
    %665 = vmatprep.subr.mxu0 0.0
    %666 = vmatpush1.msra.mxu0 0.0
    %667 = vmatprep.subr.mxu0 0.0
    %668 = vmatpush1.msra.mxu0 0.0
    %669 = vmatprep.subr.mxu0 0.0
    %670 = vmatpush1.msra.mxu0 0.0
    %671 = vmatprep.subr.mxu0 0.0
    %672 = vmatpush1.msra.mxu0 0.0
    %673 = vmatprep.subr.mxu0 0.0
    %674 = vmatpush1.msra.mxu0 0.0
    %675 = vmatprep.subr.mxu0 0.0
    %676 = vmatpush1.msra.mxu0 0.0
    %677 = vmatprep.subr.mxu0 0.0
    %678 = vmatpush1.msra.mxu0 0.0
    %679 = vmatprep.subr.mxu0 0.0
    %680 = vmatpush1.msra.mxu0 0.0
    %681 = vmatprep.subr.mxu0 0.0
    %682 = vmatpush1.msra.mxu0 0.0
    %683 = vmatprep.subr.mxu0 0.0
    %684 = vmatpush1.msra.mxu0 0.0
    %685 = vmatprep.subr.mxu0 0.0
    %686 = vmatpush1.msra.mxu0 %v218
    %687 = vmatprep.subr.mxu0 0.0
    %688 = vmatpush1.msra.mxu0 %v217
    %689 = vmatprep.subr.mxu0 0.0
    %690 = vmatpush1.msra.mxu0 %v216
    %691 = vmatprep.subr.mxu0 0.0
    %692 = vmatpush1.msra.mxu0 %v215
    %693 = vmatprep.subr.mxu0 0.0
    %694 = vmatpush2.msra.mxu0 0.0
    %695 = vmatprep.subr.mxu0 0.0
    %696 = vmatpush2.msra.mxu0 0.0
    %697 = vmatprep.subr.mxu0 0.0
    %698 = vmatpush2.msra.mxu0 0.0
    %699 = vmatprep.subr.mxu0 0.0
    %700 = vmatpush2.msra.mxu0 0.0
    %701 = vmatprep.subr.mxu0 0.0
    %702 = vmatpush2.msra.mxu0 0.0
    %703 = vmatprep.subr.mxu0 0.0
    %704 = vmatpush2.msra.mxu0 0.0
    %705 = vmatprep.subr.mxu0 0.0
    %706 = vmatpush2.msra.mxu0 0.0
    %707 = vmatprep.subr.mxu0 0.0
    %708 = vmatpush2.msra.mxu0 0.0
    %709 = vmatprep.subr.mxu0 0.0
    %710 = vmatpush2.msra.mxu0 0.0
    %711 = vmatprep.subr.mxu0 0.0
    %712 = vmatpush2.msra.mxu0 0.0
    %713 = vmatprep.subr.mxu0 0.0
    %714 = vmatpush2.msra.mxu0 0.0
    %715 = vmatprep.subr.mxu0 0.0
    %716 = vmatpush2.msra.mxu0 0.0
    %717 = vmatprep.subr.mxu0 0.0
    %718 = vmatpush2.msra.mxu0 0.0
    %719 = vmatprep.subr.mxu0 0.0
    %720 = vmatpush2.msra.mxu0 0.0
    %721 = vmatprep.subr.mxu0 0.0
    %722 = vmatpush2.msra.mxu0 0.0
    %723 = vmatprep.subr.mxu0 0.0
    %724 = vmatpush2.msra.mxu0 0.0
    %725 = vmatprep.mubr.f32.mxu0 0.0
    %726 = vmatmul.mubr.f32.gmra.mxu0 %v659
    %v727 = vpop.f32.mrf.mxu0
    %v728 = vadd.f32 0.0, %v727
    %v729 = vpop.f32.mrf.mxu0
    %730 = vdwg.mxu0
    %v732 = vrot.slane %v728, 5
    %v733 = vrot.slane %v728, 6
    %v736 = vadd.f32 %v207, %v732
    %v737 = vadd.f32 %v212, %v733
    %v738 = vxor.u32 %v736, 2147483648
    %v739 = vxor.u32 %v737, 2147483648
    %v740 = vmul.f32 %v738, 1.442695
    %v741 = vpow.pop %v740
    %v742 = vmul.f32 %v739, 1.442695
    %v743 = vpow.pop %v742
    %v744 = vadd.f32 %v741, 1.0
    %v745 = vadd.f32 %v743, 1.0
    %v746 = vrcp.pop %v744
    %v747 = vmul.f32 1.0, %v746
    %v748 = vrcp.pop %v745
    %v749 = vmul.f32 1.0, %v748
    %v750 = vtanh.pop %v736
    %v751 = vtanh.pop %v737
    %v754 = vrot.slane %v629, 7
    %v755 = vrot.slane %v630, 7
    %v758 = vmul.f32 %v747, %v754
    %v759 = vmul.f32 %v749, %v755
    %762 = vrot.lane.b32.xlu0 %v750, 64
    %v763 = vpop.permute.xlu0 %762
    %764 = vrot.lane.b32.xlu0 %v751, 64
    %v765 = vpop.permute.xlu0 %764
    %v768 = vmul.f32 %v747, %v763
    %v769 = vmul.f32 %v749, %v765
    %772 = vrot.lane.b32.xlu0 %v768, 32
    %v773 = vpop.permute.xlu0 %772
    %774 = vrot.lane.b32.xlu0 %v769, 32
    %v775 = vpop.permute.xlu0 %774
    %v778 = vadd.f32 %v758, %v773
    %v779 = vadd.f32 %v759, %v775
    %v780 = vtanh.pop %v778
    %v781 = vtanh.pop %v779
    %784 = vrot.lane.b32.xlu0 %v780, 64
    %v785 = vpop.permute.xlu0 %784
    %786 = vrot.lane.b32.xlu0 %v781, 64
    %v787 = vpop.permute.xlu0 %786
    %v790 = vmul.f32 %v747, %v785
    %v791 = vmul.f32 %v749, %v787
    %793 = vrot.lane.b32.xlu0 %v790, 32
    %v794 = vpop.permute.xlu0 %793
    %vm796 = vcmask 257027
    %797 = vst.msk [vmem:[#allocation2] sm:$0x8] %vm796, %v794
    %799 = vrot.lane.b32.xlu0 %v791, 32
    %v800 = vpop.permute.xlu0 %799
    %802 = vst.msk [vmem:[#allocation2 + $0x8] sm:$0x8] %vm796, %v800
    %v803 = vrot.slane %v790, 3
    %v804 = vrot.slane %v791, 2
    %v805 = vsel %vm359, %v804, %v803
    %806 = vrot.lane.b32.xlu0 %v805, 32
    %v807 = vpop.permute.xlu0 %806
    %v808 = vsel %vm219, %v807, 0
    %810 = vmatprep.subr.mxu0 0.0
    %811 = vmatpush1.msra.mxu0 0.0
    %812 = vmatprep.subr.mxu0 0.0
    %813 = vmatpush1.msra.mxu0 0.0
    %814 = vmatprep.subr.mxu0 0.0
    %815 = vmatpush1.msra.mxu0 0.0
    %816 = vmatprep.subr.mxu0 0.0
    %817 = vmatpush1.msra.mxu0 0.0
    %818 = vmatprep.subr.mxu0 0.0
    %819 = vmatpush1.msra.mxu0 0.0
    %820 = vmatprep.subr.mxu0 0.0
    %821 = vmatpush1.msra.mxu0 0.0
    %822 = vmatprep.subr.mxu0 0.0
    %823 = vmatpush1.msra.mxu0 0.0
    %824 = vmatprep.subr.mxu0 0.0
    %825 = vmatpush1.msra.mxu0 0.0
    %826 = vmatprep.subr.mxu0 0.0
    %827 = vmatpush1.msra.mxu0 0.0
    %828 = vmatprep.subr.mxu0 0.0
    %829 = vmatpush1.msra.mxu0 0.0
    %830 = vmatprep.subr.mxu0 0.0
    %831 = vmatpush1.msra.mxu0 0.0
    %832 = vmatprep.subr.mxu0 0.0
    %833 = vmatpush1.msra.mxu0 0.0
    %834 = vmatprep.subr.mxu0 0.0
    %835 = vmatpush1.msra.mxu0 %v218
    %836 = vmatprep.subr.mxu0 0.0
    %837 = vmatpush1.msra.mxu0 %v217
    %838 = vmatprep.subr.mxu0 0.0
    %839 = vmatpush1.msra.mxu0 %v216
    %840 = vmatprep.subr.mxu0 0.0
    %841 = vmatpush1.msra.mxu0 %v215
    %842 = vmatprep.subr.mxu0 0.0
    %843 = vmatpush2.msra.mxu0 0.0
    %844 = vmatprep.subr.mxu0 0.0
    %845 = vmatpush2.msra.mxu0 0.0
    %846 = vmatprep.subr.mxu0 0.0
    %847 = vmatpush2.msra.mxu0 0.0
    %848 = vmatprep.subr.mxu0 0.0
    %849 = vmatpush2.msra.mxu0 0.0
    %850 = vmatprep.subr.mxu0 0.0
    %851 = vmatpush2.msra.mxu0 0.0
    %852 = vmatprep.subr.mxu0 0.0
    %853 = vmatpush2.msra.mxu0 0.0
    %854 = vmatprep.subr.mxu0 0.0
    %855 = vmatpush2.msra.mxu0 0.0
    %856 = vmatprep.subr.mxu0 0.0
    %857 = vmatpush2.msra.mxu0 0.0
    %858 = vmatprep.subr.mxu0 0.0
    %859 = vmatpush2.msra.mxu0 0.0
    %860 = vmatprep.subr.mxu0 0.0
    %861 = vmatpush2.msra.mxu0 0.0
    %862 = vmatprep.subr.mxu0 0.0
    %863 = vmatpush2.msra.mxu0 0.0
    %864 = vmatprep.subr.mxu0 0.0
    %865 = vmatpush2.msra.mxu0 0.0
    %866 = vmatprep.subr.mxu0 0.0
    %867 = vmatpush2.msra.mxu0 0.0
    %868 = vmatprep.subr.mxu0 0.0
    %869 = vmatpush2.msra.mxu0 0.0
    %870 = vmatprep.subr.mxu0 0.0
    %871 = vmatpush2.msra.mxu0 0.0
    %872 = vmatprep.subr.mxu0 0.0
    %873 = vmatpush2.msra.mxu0 0.0
    %874 = vmatprep.mubr.f32.mxu0 0.0
    %875 = vmatmul.mubr.f32.gmra.mxu0 %v808
    %v876 = vpop.f32.mrf.mxu0
    %v877 = vadd.f32 0.0, %v876
    %v878 = vpop.f32.mrf.mxu0
    %879 = vdwg.mxu0
    %v881 = vrot.slane %v877, 4
    %v882 = vrot.slane %v877, 5
    %v885 = vadd.f32 %v207, %v881
    %v886 = vadd.f32 %v212, %v882
    %v887 = vxor.u32 %v885, 2147483648
    %v888 = vxor.u32 %v886, 2147483648
    %v889 = vmul.f32 %v887, 1.442695
    %v890 = vpow.pop %v889
    %v891 = vmul.f32 %v888, 1.442695
    %v892 = vpow.pop %v891
    %v893 = vadd.f32 %v890, 1.0
    %v894 = vadd.f32 %v892, 1.0
    %v895 = vrcp.pop %v893
    %v896 = vmul.f32 1.0, %v895
    %v897 = vrcp.pop %v894
    %v898 = vmul.f32 1.0, %v897
    %v899 = vtanh.pop %v885
    %v900 = vtanh.pop %v886
    %v903 = vrot.slane %v778, 7
    %v904 = vrot.slane %v779, 7
    %v907 = vmul.f32 %v896, %v903
    %v908 = vmul.f32 %v898, %v904
    %911 = vrot.lane.b32.xlu0 %v899, 64
    %v912 = vpop.permute.xlu0 %911
    %913 = vrot.lane.b32.xlu0 %v900, 64
    %v914 = vpop.permute.xlu0 %913
    %v917 = vmul.f32 %v896, %v912
    %v918 = vmul.f32 %v898, %v914
    %921 = vrot.lane.b32.xlu0 %v917, 32
    %v922 = vpop.permute.xlu0 %921
    %923 = vrot.lane.b32.xlu0 %v918, 32
    %v924 = vpop.permute.xlu0 %923
    %v927 = vadd.f32 %v907, %v922
    %v928 = vadd.f32 %v908, %v924
    %v929 = vtanh.pop %v927
    %v930 = vtanh.pop %v928
    %933 = vrot.lane.b32.xlu0 %v929, 64
    %v934 = vpop.permute.xlu0 %933
    %935 = vrot.lane.b32.xlu0 %v930, 64
    %v936 = vpop.permute.xlu0 %935
    %v939 = vmul.f32 %v896, %v934
    %v940 = vmul.f32 %v898, %v936
    %942 = vrot.lane.b32.xlu0 %v939, 32
    %v943 = vpop.permute.xlu0 %942
    %vm945 = vcmask 258052
    %946 = vst.msk [vmem:[#allocation2] sm:$0x10] %vm945, %v943
    %948 = vrot.lane.b32.xlu0 %v940, 32
    %v949 = vpop.permute.xlu0 %948
    %951 = vst.msk [vmem:[#allocation2 + $0x8] sm:$0x10] %vm945, %v949
    %v952 = vrot.slane %v939, 4
    %v953 = vrot.slane %v940, 3
    %v954 = vsel %vm359, %v953, %v952
    %955 = vrot.lane.b32.xlu0 %v954, 32
    %v956 = vpop.permute.xlu0 %955
    %v957 = vsel %vm219, %v956, 0
    %959 = vmatprep.subr.mxu0 0.0
    %960 = vmatpush1.msra.mxu0 0.0
    %961 = vmatprep.subr.mxu0 0.0
    %962 = vmatpush1.msra.mxu0 0.0
    %963 = vmatprep.subr.mxu0 0.0
    %964 = vmatpush1.msra.mxu0 0.0
    %965 = vmatprep.subr.mxu0 0.0
    %966 = vmatpush1.msra.mxu0 0.0
    %967 = vmatprep.subr.mxu0 0.0
    %968 = vmatpush1.msra.mxu0 0.0
    %969 = vmatprep.subr.mxu0 0.0
    %970 = vmatpush1.msra.mxu0 0.0
    %971 = vmatprep.subr.mxu0 0.0
    %972 = vmatpush1.msra.mxu0 0.0
    %973 = vmatprep.subr.mxu0 0.0
    %974 = vmatpush1.msra.mxu0 0.0
    %975 = vmatprep.subr.mxu0 0.0
    %976 = vmatpush1.msra.mxu0 0.0
    %977 = vmatprep.subr.mxu0 0.0
    %978 = vmatpush1.msra.mxu0 0.0
    %979 = vmatprep.subr.mxu0 0.0
    %980 = vmatpush1.msra.mxu0 0.0
    %981 = vmatprep.subr.mxu0 0.0
    %982 = vmatpush1.msra.mxu0 0.0
    %983 = vmatprep.subr.mxu0 0.0
    %984 = vmatpush1.msra.mxu0 %v218
    %985 = vmatprep.subr.mxu0 0.0
    %986 = vmatpush1.msra.mxu0 %v217
    %987 = vmatprep.subr.mxu0 0.0
    %988 = vmatpush1.msra.mxu0 %v216
    %989 = vmatprep.subr.mxu0 0.0
    %990 = vmatpush1.msra.mxu0 %v215
    %991 = vmatprep.subr.mxu0 0.0
    %992 = vmatpush2.msra.mxu0 0.0
    %993 = vmatprep.subr.mxu0 0.0
    %994 = vmatpush2.msra.mxu0 0.0
    %995 = vmatprep.subr.mxu0 0.0
    %996 = vmatpush2.msra.mxu0 0.0
    %997 = vmatprep.subr.mxu0 0.0
    %998 = vmatpush2.msra.mxu0 0.0
    %999 = vmatprep.subr.mxu0 0.0
    %1000 = vmatpush2.msra.mxu0 0.0
    %1001 = vmatprep.subr.mxu0 0.0
    %1002 = vmatpush2.msra.mxu0 0.0
    %1003 = vmatprep.subr.mxu0 0.0
    %1004 = vmatpush2.msra.mxu0 0.0
    %1005 = vmatprep.subr.mxu0 0.0
    %1006 = vmatpush2.msra.mxu0 0.0
    %1007 = vmatprep.subr.mxu0 0.0
    %1008 = vmatpush2.msra.mxu0 0.0
    %1009 = vmatprep.subr.mxu0 0.0
    %1010 = vmatpush2.msra.mxu0 0.0
    %1011 = vmatprep.subr.mxu0 0.0
    %1012 = vmatpush2.msra.mxu0 0.0
    %1013 = vmatprep.subr.mxu0 0.0
    %1014 = vmatpush2.msra.mxu0 0.0
    %1015 = vmatprep.subr.mxu0 0.0
    %1016 = vmatpush2.msra.mxu0 0.0
    %1017 = vmatprep.subr.mxu0 0.0
    %1018 = vmatpush2.msra.mxu0 0.0
    %1019 = vmatprep.subr.mxu0 0.0
    %1020 = vmatpush2.msra.mxu0 0.0
    %1021 = vmatprep.subr.mxu0 0.0
    %1022 = vmatpush2.msra.mxu0 0.0
    %1023 = vmatprep.mubr.f32.mxu0 0.0
    %1024 = vmatmul.mubr.f32.gmra.mxu0 %v957
    %v1025 = vpop.f32.mrf.mxu0
    %v1026 = vadd.f32 0.0, %v1025
    %v1027 = vpop.f32.mrf.mxu0
    %1028 = vdwg.mxu0
    %v1030 = vrot.slane %v1026, 3
    %v1031 = vrot.slane %v1026, 4
    %v1034 = vadd.f32 %v207, %v1030
    %v1035 = vadd.f32 %v212, %v1031
    %v1036 = vxor.u32 %v1034, 2147483648
    %v1037 = vxor.u32 %v1035, 2147483648
    %v1038 = vmul.f32 %v1036, 1.442695
    %v1039 = vpow.pop %v1038
    %v1040 = vmul.f32 %v1037, 1.442695
    %v1041 = vpow.pop %v1040
    %v1042 = vadd.f32 %v1039, 1.0
    %v1043 = vadd.f32 %v1041, 1.0
    %v1044 = vrcp.pop %v1042
    %v1045 = vmul.f32 1.0, %v1044
    %v1046 = vrcp.pop %v1043
    %v1047 = vmul.f32 1.0, %v1046
    %v1048 = vtanh.pop %v1034
    %v1049 = vtanh.pop %v1035
    %v1052 = vrot.slane %v927, 7
    %v1053 = vrot.slane %v928, 7
    %v1056 = vmul.f32 %v1045, %v1052
    %v1057 = vmul.f32 %v1047, %v1053
    %1060 = vrot.lane.b32.xlu0 %v1048, 64
    %v1061 = vpop.permute.xlu0 %1060
    %1062 = vrot.lane.b32.xlu0 %v1049, 64
    %v1063 = vpop.permute.xlu0 %1062
    %v1066 = vmul.f32 %v1045, %v1061
    %v1067 = vmul.f32 %v1047, %v1063
    %1070 = vrot.lane.b32.xlu0 %v1066, 32
    %v1071 = vpop.permute.xlu0 %1070
    %1072 = vrot.lane.b32.xlu0 %v1067, 32
    %v1073 = vpop.permute.xlu0 %1072
    %v1076 = vadd.f32 %v1056, %v1071
    %v1077 = vadd.f32 %v1057, %v1073
    %v1078 = vtanh.pop %v1076
    %v1079 = vtanh.pop %v1077
    %1082 = vrot.lane.b32.xlu0 %v1078, 64
    %v1083 = vpop.permute.xlu0 %1082
    %1084 = vrot.lane.b32.xlu0 %v1079, 64
    %v1085 = vpop.permute.xlu0 %1084
    %v1088 = vmul.f32 %v1045, %v1083
    %v1089 = vmul.f32 %v1047, %v1085
    %1091 = vrot.lane.b32.xlu0 %v1088, 32
    %v1092 = vpop.permute.xlu0 %1091
    %vm1094 = vcmask 259077
    %1095 = vst.msk [vmem:[#allocation2] sm:$0x20] %vm1094, %v1092
    %1097 = vrot.lane.b32.xlu0 %v1089, 32
    %v1098 = vpop.permute.xlu0 %1097
    %1100 = vst.msk [vmem:[#allocation2 + $0x8] sm:$0x20] %vm1094, %v1098
    %v1101 = vrot.slane %v1088, 5
    %v1102 = vrot.slane %v1089, 4
    %v1103 = vsel %vm359, %v1102, %v1101
    %1104 = vrot.lane.b32.xlu0 %v1103, 32
    %v1105 = vpop.permute.xlu0 %1104
    %v1106 = vsel %vm219, %v1105, 0
    %1108 = vmatprep.subr.mxu0 0.0
    %1109 = vmatpush1.msra.mxu0 0.0
    %1110 = vmatprep.subr.mxu0 0.0
    %1111 = vmatpush1.msra.mxu0 0.0
    %1112 = vmatprep.subr.mxu0 0.0
    %1113 = vmatpush1.msra.mxu0 0.0
    %1114 = vmatprep.subr.mxu0 0.0
    %1115 = vmatpush1.msra.mxu0 0.0
    %1116 = vmatprep.subr.mxu0 0.0
    %1117 = vmatpush1.msra.mxu0 0.0
    %1118 = vmatprep.subr.mxu0 0.0
    %1119 = vmatpush1.msra.mxu0 0.0
    %1120 = vmatprep.subr.mxu0 0.0
    %1121 = vmatpush1.msra.mxu0 0.0
    %1122 = vmatprep.subr.mxu0 0.0
    %1123 = vmatpush1.msra.mxu0 0.0
    %1124 = vmatprep.subr.mxu0 0.0
    %1125 = vmatpush1.msra.mxu0 0.0
    %1126 = vmatprep.subr.mxu0 0.0
    %1127 = vmatpush1.msra.mxu0 0.0
    %1128 = vmatprep.subr.mxu0 0.0
    %1129 = vmatpush1.msra.mxu0 0.0
    %1130 = vmatprep.subr.mxu0 0.0
    %1131 = vmatpush1.msra.mxu0 0.0
    %1132 = vmatprep.subr.mxu0 0.0
    %1133 = vmatpush1.msra.mxu0 %v218
    %1134 = vmatprep.subr.mxu0 0.0
    %1135 = vmatpush1.msra.mxu0 %v217
    %1136 = vmatprep.subr.mxu0 0.0
    %1137 = vmatpush1.msra.mxu0 %v216
    %1138 = vmatprep.subr.mxu0 0.0
    %1139 = vmatpush1.msra.mxu0 %v215
    %1140 = vmatprep.subr.mxu0 0.0
    %1141 = vmatpush2.msra.mxu0 0.0
    %1142 = vmatprep.subr.mxu0 0.0
    %1143 = vmatpush2.msra.mxu0 0.0
    %1144 = vmatprep.subr.mxu0 0.0
    %1145 = vmatpush2.msra.mxu0 0.0
    %1146 = vmatprep.subr.mxu0 0.0
    %1147 = vmatpush2.msra.mxu0 0.0
    %1148 = vmatprep.subr.mxu0 0.0
    %1149 = vmatpush2.msra.mxu0 0.0
    %1150 = vmatprep.subr.mxu0 0.0
    %1151 = vmatpush2.msra.mxu0 0.0
    %1152 = vmatprep.subr.mxu0 0.0
    %1153 = vmatpush2.msra.mxu0 0.0
    %1154 = vmatprep.subr.mxu0 0.0
    %1155 = vmatpush2.msra.mxu0 0.0
    %1156 = vmatprep.subr.mxu0 0.0
    %1157 = vmatpush2.msra.mxu0 0.0
    %1158 = vmatprep.subr.mxu0 0.0
    %1159 = vmatpush2.msra.mxu0 0.0
    %1160 = vmatprep.subr.mxu0 0.0
    %1161 = vmatpush2.msra.mxu0 0.0
    %1162 = vmatprep.subr.mxu0 0.0
    %1163 = vmatpush2.msra.mxu0 0.0
    %1164 = vmatprep.subr.mxu0 0.0
    %1165 = vmatpush2.msra.mxu0 0.0
    %1166 = vmatprep.subr.mxu0 0.0
    %1167 = vmatpush2.msra.mxu0 0.0
    %1168 = vmatprep.subr.mxu0 0.0
    %1169 = vmatpush2.msra.mxu0 0.0
    %1170 = vmatprep.subr.mxu0 0.0
    %1171 = vmatpush2.msra.mxu0 0.0
    %1172 = vmatprep.mubr.f32.mxu0 0.0
    %1173 = vmatmul.mubr.f32.gmra.mxu0 %v1106
    %v1174 = vpop.f32.mrf.mxu0
    %v1175 = vadd.f32 0.0, %v1174
    %v1176 = vpop.f32.mrf.mxu0
    %1177 = vdwg.mxu0
    %v1179 = vrot.slane %v1175, 2
    %v1180 = vrot.slane %v1175, 3
    %v1183 = vadd.f32 %v207, %v1179
    %v1184 = vadd.f32 %v212, %v1180
    %v1185 = vxor.u32 %v1183, 2147483648
    %v1186 = vxor.u32 %v1184, 2147483648
    %v1187 = vmul.f32 %v1185, 1.442695
    %v1188 = vpow.pop %v1187
    %v1189 = vmul.f32 %v1186, 1.442695
    %v1190 = vpow.pop %v1189
    %v1191 = vadd.f32 %v1188, 1.0
    %v1192 = vadd.f32 %v1190, 1.0
    %v1193 = vrcp.pop %v1191
    %v1194 = vmul.f32 1.0, %v1193
    %v1195 = vrcp.pop %v1192
    %v1196 = vmul.f32 1.0, %v1195
    %v1197 = vtanh.pop %v1183
    %v1198 = vtanh.pop %v1184
    %v1201 = vrot.slane %v1076, 7
    %v1202 = vrot.slane %v1077, 7
    %v1205 = vmul.f32 %v1194, %v1201
    %v1206 = vmul.f32 %v1196, %v1202
    %1209 = vrot.lane.b32.xlu0 %v1197, 64
    %v1210 = vpop.permute.xlu0 %1209
    %1211 = vrot.lane.b32.xlu0 %v1198, 64
    %v1212 = vpop.permute.xlu0 %1211
    %v1215 = vmul.f32 %v1194, %v1210
    %v1216 = vmul.f32 %v1196, %v1212
    %1219 = vrot.lane.b32.xlu0 %v1215, 32
    %v1220 = vpop.permute.xlu0 %1219
    %1221 = vrot.lane.b32.xlu0 %v1216, 32
    %v1222 = vpop.permute.xlu0 %1221
    %v1225 = vadd.f32 %v1205, %v1220
    %v1226 = vadd.f32 %v1206, %v1222
    %v1227 = vtanh.pop %v1225
    %v1228 = vtanh.pop %v1226
    %1231 = vrot.lane.b32.xlu0 %v1227, 64
    %v1232 = vpop.permute.xlu0 %1231
    %1233 = vrot.lane.b32.xlu0 %v1228, 64
    %v1234 = vpop.permute.xlu0 %1233
    %v1237 = vmul.f32 %v1194, %v1232
    %v1238 = vmul.f32 %v1196, %v1234
    %1240 = vrot.lane.b32.xlu0 %v1237, 32
    %v1241 = vpop.permute.xlu0 %1240
    %vm1243 = vcmask 260102
    %1244 = vst.msk [vmem:[#allocation2] sm:$0x40] %vm1243, %v1241
    %1246 = vrot.lane.b32.xlu0 %v1238, 32
    %v1247 = vpop.permute.xlu0 %1246
    %1249 = vst.msk [vmem:[#allocation2 + $0x8] sm:$0x40] %vm1243, %v1247
    %v1250 = vrot.slane %v1237, 6
    %v1251 = vrot.slane %v1238, 5
    %v1252 = vsel %vm359, %v1251, %v1250
    %1253 = vrot.lane.b32.xlu0 %v1252, 32
    %v1254 = vpop.permute.xlu0 %1253
    %v1255 = vsel %vm219, %v1254, 0
    %1257 = vmatprep.subr.mxu0 0.0
    %1258 = vmatpush1.msra.mxu0 0.0
    %1259 = vmatprep.subr.mxu0 0.0
    %1260 = vmatpush1.msra.mxu0 0.0
    %1261 = vmatprep.subr.mxu0 0.0
    %1262 = vmatpush1.msra.mxu0 0.0
    %1263 = vmatprep.subr.mxu0 0.0
    %1264 = vmatpush1.msra.mxu0 0.0
    %1265 = vmatprep.subr.mxu0 0.0
    %1266 = vmatpush1.msra.mxu0 0.0
    %1267 = vmatprep.subr.mxu0 0.0
    %1268 = vmatpush1.msra.mxu0 0.0
    %1269 = vmatprep.subr.mxu0 0.0
    %1270 = vmatpush1.msra.mxu0 0.0
    %1271 = vmatprep.subr.mxu0 0.0
    %1272 = vmatpush1.msra.mxu0 0.0
    %1273 = vmatprep.subr.mxu0 0.0
    %1274 = vmatpush1.msra.mxu0 0.0
    %1275 = vmatprep.subr.mxu0 0.0
    %1276 = vmatpush1.msra.mxu0 0.0
    %1277 = vmatprep.subr.mxu0 0.0
    %1278 = vmatpush1.msra.mxu0 0.0
    %1279 = vmatprep.subr.mxu0 0.0
    %1280 = vmatpush1.msra.mxu0 0.0
    %1281 = vmatprep.subr.mxu0 0.0
    %1282 = vmatpush1.msra.mxu0 %v218
    %1283 = vmatprep.subr.mxu0 0.0
    %1284 = vmatpush1.msra.mxu0 %v217
    %1285 = vmatprep.subr.mxu0 0.0
    %1286 = vmatpush1.msra.mxu0 %v216
    %1287 = vmatprep.subr.mxu0 0.0
    %1288 = vmatpush1.msra.mxu0 %v215
    %1289 = vmatprep.subr.mxu0 0.0
    %1290 = vmatpush2.msra.mxu0 0.0
    %1291 = vmatprep.subr.mxu0 0.0
    %1292 = vmatpush2.msra.mxu0 0.0
    %1293 = vmatprep.subr.mxu0 0.0
    %1294 = vmatpush2.msra.mxu0 0.0
    %1295 = vmatprep.subr.mxu0 0.0
    %1296 = vmatpush2.msra.mxu0 0.0
    %1297 = vmatprep.subr.mxu0 0.0
    %1298 = vmatpush2.msra.mxu0 0.0
    %1299 = vmatprep.subr.mxu0 0.0
    %1300 = vmatpush2.msra.mxu0 0.0
    %1301 = vmatprep.subr.mxu0 0.0
    %1302 = vmatpush2.msra.mxu0 0.0
    %1303 = vmatprep.subr.mxu0 0.0
    %1304 = vmatpush2.msra.mxu0 0.0
    %1305 = vmatprep.subr.mxu0 0.0
    %1306 = vmatpush2.msra.mxu0 0.0
    %1307 = vmatprep.subr.mxu0 0.0
    %1308 = vmatpush2.msra.mxu0 0.0
    %1309 = vmatprep.subr.mxu0 0.0
    %1310 = vmatpush2.msra.mxu0 0.0
    %1311 = vmatprep.subr.mxu0 0.0
    %1312 = vmatpush2.msra.mxu0 0.0
    %1313 = vmatprep.subr.mxu0 0.0
    %1314 = vmatpush2.msra.mxu0 0.0
    %1315 = vmatprep.subr.mxu0 0.0
    %1316 = vmatpush2.msra.mxu0 0.0
    %1317 = vmatprep.subr.mxu0 0.0
    %1318 = vmatpush2.msra.mxu0 0.0
    %1319 = vmatprep.subr.mxu0 0.0
    %1320 = vmatpush2.msra.mxu0 0.0
    %1321 = vmatprep.mubr.f32.mxu0 0.0
    %1322 = vmatmul.mubr.f32.gmra.mxu0 %v1255
    %v1323 = vpop.f32.mrf.mxu0
    %v1324 = vadd.f32 0.0, %v1323
    %v1325 = vpop.f32.mrf.mxu0
    %1326 = vdwg.mxu0
    %v1328 = vrot.slane %v1324, 1
    %v1329 = vrot.slane %v1324, 2
    %v1332 = vadd.f32 %v207, %v1328
    %v1333 = vadd.f32 %v212, %v1329
    %v1334 = vxor.u32 %v1332, 2147483648
    %v1335 = vxor.u32 %v1333, 2147483648
    %v1336 = vmul.f32 %v1334, 1.442695
    %v1337 = vpow.pop %v1336
    %v1338 = vmul.f32 %v1335, 1.442695
    %v1339 = vpow.pop %v1338
    %v1340 = vadd.f32 %v1337, 1.0
    %v1341 = vadd.f32 %v1339, 1.0
    %v1342 = vrcp.pop %v1340
    %v1343 = vmul.f32 1.0, %v1342
    %v1344 = vrcp.pop %v1341
    %v1345 = vmul.f32 1.0, %v1344
    %v1346 = vtanh.pop %v1332
    %v1347 = vtanh.pop %v1333
    %v1350 = vrot.slane %v1225, 7
    %v1351 = vrot.slane %v1226, 7
    %v1354 = vmul.f32 %v1343, %v1350
    %v1355 = vmul.f32 %v1345, %v1351
    %1358 = vrot.lane.b32.xlu0 %v1346, 64
    %v1359 = vpop.permute.xlu0 %1358
    %1360 = vrot.lane.b32.xlu0 %v1347, 64
    %v1361 = vpop.permute.xlu0 %1360
    %v1364 = vmul.f32 %v1343, %v1359
    %v1365 = vmul.f32 %v1345, %v1361
    %1368 = vrot.lane.b32.xlu0 %v1364, 32
    %v1369 = vpop.permute.xlu0 %1368
    %1370 = vrot.lane.b32.xlu0 %v1365, 32
    %v1371 = vpop.permute.xlu0 %1370
    %v1374 = vadd.f32 %v1354, %v1369
    %v1375 = vadd.f32 %v1355, %v1371
    %v1376 = vtanh.pop %v1374
    %v1377 = vtanh.pop %v1375
    %1380 = vrot.lane.b32.xlu0 %v1376, 64
    %v1381 = vpop.permute.xlu0 %1380
    %1382 = vrot.lane.b32.xlu0 %v1377, 64
    %v1383 = vpop.permute.xlu0 %1382
    %v1386 = vmul.f32 %v1343, %v1381
    %v1387 = vmul.f32 %v1345, %v1383
    %1389 = vrot.lane.b32.xlu0 %v1386, 32
    %v1390 = vpop.permute.xlu0 %1389
    %vm1392 = vcmask 261127
    %1393 = vst.msk [vmem:[#allocation2] sm:$0x80] %vm1392, %v1390
    %1395 = vrot.lane.b32.xlu0 %v1387, 32
    %v1396 = vpop.permute.xlu0 %1395
    %1398 = vst.msk [vmem:[#allocation2 + $0x8] sm:$0x80] %vm1392, %v1396
    %v1399 = vld [vmem:[#allocation2] sm:$0xff]
    %v1400 = vld [vmem:[#allocation2 + $0x8] sm:$0xff]
    %v1401 = vld [vmem:[#allocation9] sm:$0xff]
    %v1402 = vld [vmem:[#allocation9 + $0x8] sm:$0xff]
    %v1403 = vld [vmem:[#allocation9 + $0x10] sm:$0xff]
    %v1404 = vld [vmem:[#allocation9 + $0x18] sm:$0xff]
    %v1405 = vld [vmem:[%s5] sm:$0x1]
    %v1407 = vlaneseq
    %v1408 = vshrl.u32 %v1407, 7
    %v1409 = vsub.s32 0, %v1408
    %v1410 = vrot.slane %v1405, %v1409
    %v1413 = vsel %vm219, %v1399, 0
    %v1416 = vsel %vm219, %v1400, 0
    %1418 = vmatprep.subr.mxu0 0.0
    %1419 = vmatpush1.msra.mxu0 0.0
    %1420 = vmatprep.subr.mxu0 0.0
    %1421 = vmatpush1.msra.mxu0 0.0
    %1422 = vmatprep.subr.mxu0 0.0
    %1423 = vmatpush1.msra.mxu0 0.0
    %1424 = vmatprep.subr.mxu0 0.0
    %1425 = vmatpush1.msra.mxu0 0.0
    %1426 = vmatprep.subr.mxu0 0.0
    %1427 = vmatpush1.msra.mxu0 0.0
    %1428 = vmatprep.subr.mxu0 0.0
    %1429 = vmatpush1.msra.mxu0 0.0
    %1430 = vmatprep.subr.mxu0 0.0
    %1431 = vmatpush1.msra.mxu0 0.0
    %1432 = vmatprep.subr.mxu0 0.0
    %1433 = vmatpush1.msra.mxu0 0.0
    %1434 = vmatprep.subr.mxu0 0.0
    %1435 = vmatpush1.msra.mxu0 0.0
    %1436 = vmatprep.subr.mxu0 0.0
    %1437 = vmatpush1.msra.mxu0 0.0
    %1438 = vmatprep.subr.mxu0 0.0
    %1439 = vmatpush1.msra.mxu0 0.0
    %1440 = vmatprep.subr.mxu0 0.0
    %1441 = vmatpush1.msra.mxu0 0.0
    %1442 = vmatprep.subr.mxu0 0.0
    %1443 = vmatpush1.msra.mxu0 %v1404
    %1444 = vmatprep.subr.mxu0 0.0
    %1445 = vmatpush1.msra.mxu0 %v1403
    %1446 = vmatprep.subr.mxu0 0.0
    %1447 = vmatpush1.msra.mxu0 %v1402
    %1448 = vmatprep.subr.mxu0 0.0
    %1449 = vmatpush1.msra.mxu0 %v1401
    %1450 = vmatprep.subr.mxu0 0.0
    %1451 = vmatpush2.msra.mxu0 0.0
    %1452 = vmatprep.subr.mxu0 0.0
    %1453 = vmatpush2.msra.mxu0 0.0
    %1454 = vmatprep.subr.mxu0 0.0
    %1455 = vmatpush2.msra.mxu0 0.0
    %1456 = vmatprep.subr.mxu0 0.0
    %1457 = vmatpush2.msra.mxu0 0.0
    %1458 = vmatprep.subr.mxu0 0.0
    %1459 = vmatpush2.msra.mxu0 0.0
    %1460 = vmatprep.subr.mxu0 0.0
    %1461 = vmatpush2.msra.mxu0 0.0
    %1462 = vmatprep.subr.mxu0 0.0
    %1463 = vmatpush2.msra.mxu0 0.0
    %1464 = vmatprep.subr.mxu0 0.0
    %1465 = vmatpush2.msra.mxu0 0.0
    %1466 = vmatprep.subr.mxu0 0.0
    %1467 = vmatpush2.msra.mxu0 0.0
    %1468 = vmatprep.subr.mxu0 0.0
    %1469 = vmatpush2.msra.mxu0 0.0
    %1470 = vmatprep.subr.mxu0 0.0
    %1471 = vmatpush2.msra.mxu0 0.0
    %1472 = vmatprep.subr.mxu0 0.0
    %1473 = vmatpush2.msra.mxu0 0.0
    %1474 = vmatprep.subr.mxu0 0.0
    %1475 = vmatpush2.msra.mxu0 0.0
    %1476 = vmatprep.subr.mxu0 0.0
    %1477 = vmatpush2.msra.mxu0 0.0
    %1478 = vmatprep.subr.mxu0 0.0
    %1479 = vmatpush2.msra.mxu0 0.0
    %1480 = vmatprep.subr.mxu0 0.0
    %1481 = vmatpush2.msra.mxu0 0.0
    %1482 = vmatprep.mubr.f32.mxu0 0.0
    %1483 = vmatmul.mubr.f32.gmra.mxu0 %v1413
    %v1484 = vpop.f32.mrf.mxu0
    %v1485 = vadd.f32 %v1410, %v1484
    %v1486 = vpop.f32.mrf.mxu0
    %1487 = vmatprep.mubr.f32.mxu0 0.0
    %1488 = vmatmul.mubr.f32.gmra.mxu0 %v1416
    %v1489 = vpop.f32.mrf.mxu0
    %v1490 = vadd.f32 %v1410, %v1489
    %v1491 = vpop.f32.mrf.mxu0
    %1492 = vdwg.mxu0
    %v1493 = vmax.f32 %v1485, 0.0
    %v1494 = vmax.f32 %v1490, 0.0
    %v1495 = vld [vmem:[#allocation11] sm:$0xff]
    %v1496 = vld [vmem:[#allocation11 + $0x8] sm:$0xff]
    %v1497 = vld [vmem:[#allocation11 + $0x10] sm:$0xff]
    %v1498 = vld [vmem:[#allocation11 + $0x18] sm:$0xff]
    %v1499 = vld [vmem:[%s7] sm:$0x1]
    %v1501 = vlaneseq
    %v1502 = vshrl.u32 %v1501, 7
    %v1503 = vsub.s32 0, %v1502
    %v1504 = vrot.slane %v1499, %v1503
    %v1507 = vsel %vm219, %v1493, 0
    %v1510 = vsel %vm219, %v1494, 0
    %1512 = vmatprep.subr.mxu0 0.0
    %1513 = vmatpush1.msra.mxu0 0.0
    %1514 = vmatprep.subr.mxu0 0.0
    %1515 = vmatpush1.msra.mxu0 0.0
    %1516 = vmatprep.subr.mxu0 0.0
    %1517 = vmatpush1.msra.mxu0 0.0
    %1518 = vmatprep.subr.mxu0 0.0
    %1519 = vmatpush1.msra.mxu0 0.0
    %1520 = vmatprep.subr.mxu0 0.0
    %1521 = vmatpush1.msra.mxu0 0.0
    %1522 = vmatprep.subr.mxu0 0.0
    %1523 = vmatpush1.msra.mxu0 0.0
    %1524 = vmatprep.subr.mxu0 0.0
    %1525 = vmatpush1.msra.mxu0 0.0
    %1526 = vmatprep.subr.mxu0 0.0
    %1527 = vmatpush1.msra.mxu0 0.0
    %1528 = vmatprep.subr.mxu0 0.0
    %1529 = vmatpush1.msra.mxu0 0.0
    %1530 = vmatprep.subr.mxu0 0.0
    %1531 = vmatpush1.msra.mxu0 0.0
    %1532 = vmatprep.subr.mxu0 0.0
    %1533 = vmatpush1.msra.mxu0 0.0
    %1534 = vmatprep.subr.mxu0 0.0
    %1535 = vmatpush1.msra.mxu0 0.0
    %1536 = vmatprep.subr.mxu0 0.0
    %1537 = vmatpush1.msra.mxu0 %v1498
    %1538 = vmatprep.subr.mxu0 0.0
    %1539 = vmatpush1.msra.mxu0 %v1497
    %1540 = vmatprep.subr.mxu0 0.0
    %1541 = vmatpush1.msra.mxu0 %v1496
    %1542 = vmatprep.subr.mxu0 0.0
    %1543 = vmatpush1.msra.mxu0 %v1495
    %1544 = vmatprep.subr.mxu0 0.0
    %1545 = vmatpush2.msra.mxu0 0.0
    %1546 = vmatprep.subr.mxu0 0.0
    %1547 = vmatpush2.msra.mxu0 0.0
    %1548 = vmatprep.subr.mxu0 0.0
    %1549 = vmatpush2.msra.mxu0 0.0
    %1550 = vmatprep.subr.mxu0 0.0
    %1551 = vmatpush2.msra.mxu0 0.0
    %1552 = vmatprep.subr.mxu0 0.0
    %1553 = vmatpush2.msra.mxu0 0.0
    %1554 = vmatprep.subr.mxu0 0.0
    %1555 = vmatpush2.msra.mxu0 0.0
    %1556 = vmatprep.subr.mxu0 0.0
    %1557 = vmatpush2.msra.mxu0 0.0
    %1558 = vmatprep.subr.mxu0 0.0
    %1559 = vmatpush2.msra.mxu0 0.0
    %1560 = vmatprep.subr.mxu0 0.0
    %1561 = vmatpush2.msra.mxu0 0.0
    %1562 = vmatprep.subr.mxu0 0.0
    %1563 = vmatpush2.msra.mxu0 0.0
    %1564 = vmatprep.subr.mxu0 0.0
    %1565 = vmatpush2.msra.mxu0 0.0
    %1566 = vmatprep.subr.mxu0 0.0
    %1567 = vmatpush2.msra.mxu0 0.0
    %1568 = vmatprep.subr.mxu0 0.0
    %1569 = vmatpush2.msra.mxu0 0.0
    %1570 = vmatprep.subr.mxu0 0.0
    %1571 = vmatpush2.msra.mxu0 0.0
    %1572 = vmatprep.subr.mxu0 0.0
    %1573 = vmatpush2.msra.mxu0 0.0
    %1574 = vmatprep.subr.mxu0 0.0
    %1575 = vmatpush2.msra.mxu0 0.0
    %1576 = vmatprep.mubr.f32.mxu0 0.0
    %1577 = vmatmul.mubr.f32.gmra.mxu0 %v1507
    %v1578 = vpop.f32.mrf.mxu0
    %v1579 = vadd.f32 %v1504, %v1578
    %v1580 = vpop.f32.mrf.mxu0
    %1581 = vmatprep.mubr.f32.mxu0 0.0
    %1582 = vmatmul.mubr.f32.gmra.mxu0 %v1510
    %v1583 = vpop.f32.mrf.mxu0
    %v1584 = vadd.f32 %v1504, %v1583
    %v1585 = vpop.f32.mrf.mxu0
    %1586 = vdwg.mxu0
    %v1587 = vmax.f32 %v1579, 0.0
    %v1588 = vmax.f32 %v1584, 0.0
    %v1589 = vld [vmem:[#allocation12] sm:$0xff]
    %v1590 = vld [vmem:[#allocation12 + $0x8] sm:$0xff]
    %v1591 = vld [vmem:[#allocation12 + $0x10] sm:$0xff]
    %v1592 = vld [vmem:[#allocation12 + $0x18] sm:$0xff]
    %v1593 = vld [vmem:[%s9] sm:$0x1]
    %v1595 = vlaneseq
    %v1596 = vshrl.u32 %v1595, 7
    %v1597 = vsub.s32 0, %v1596
    %v1598 = vrot.slane %v1593, %v1597
    %v1601 = vsel %vm219, %v1587, 0
    %v1604 = vsel %vm219, %v1588, 0
    %1606 = vmatprep.subr.mxu0 0.0
    %1607 = vmatpush1.msra.mxu0 0.0
    %1608 = vmatprep.subr.mxu0 0.0
    %1609 = vmatpush1.msra.mxu0 0.0
    %1610 = vmatprep.subr.mxu0 0.0
    %1611 = vmatpush1.msra.mxu0 0.0
    %1612 = vmatprep.subr.mxu0 0.0
    %1613 = vmatpush1.msra.mxu0 0.0
    %1614 = vmatprep.subr.mxu0 0.0
    %1615 = vmatpush1.msra.mxu0 0.0
    %1616 = vmatprep.subr.mxu0 0.0
    %1617 = vmatpush1.msra.mxu0 0.0
    %1618 = vmatprep.subr.mxu0 0.0
    %1619 = vmatpush1.msra.mxu0 0.0
    %1620 = vmatprep.subr.mxu0 0.0
    %1621 = vmatpush1.msra.mxu0 0.0
    %1622 = vmatprep.subr.mxu0 0.0
    %1623 = vmatpush1.msra.mxu0 0.0
    %1624 = vmatprep.subr.mxu0 0.0
    %1625 = vmatpush1.msra.mxu0 0.0
    %1626 = vmatprep.subr.mxu0 0.0
    %1627 = vmatpush1.msra.mxu0 0.0
    %1628 = vmatprep.subr.mxu0 0.0
    %1629 = vmatpush1.msra.mxu0 0.0
    %1630 = vmatprep.subr.mxu0 0.0
    %1631 = vmatpush1.msra.mxu0 %v1592
    %1632 = vmatprep.subr.mxu0 0.0
    %1633 = vmatpush1.msra.mxu0 %v1591
    %1634 = vmatprep.subr.mxu0 0.0
    %1635 = vmatpush1.msra.mxu0 %v1590
    %1636 = vmatprep.subr.mxu0 0.0
    %1637 = vmatpush1.msra.mxu0 %v1589
    %1638 = vmatprep.subr.mxu0 0.0
    %1639 = vmatpush2.msra.mxu0 0.0
    %1640 = vmatprep.subr.mxu0 0.0
    %1641 = vmatpush2.msra.mxu0 0.0
    %1642 = vmatprep.subr.mxu0 0.0
    %1643 = vmatpush2.msra.mxu0 0.0
    %1644 = vmatprep.subr.mxu0 0.0
    %1645 = vmatpush2.msra.mxu0 0.0
    %1646 = vmatprep.subr.mxu0 0.0
    %1647 = vmatpush2.msra.mxu0 0.0
    %1648 = vmatprep.subr.mxu0 0.0
    %1649 = vmatpush2.msra.mxu0 0.0
    %1650 = vmatprep.subr.mxu0 0.0
    %1651 = vmatpush2.msra.mxu0 0.0
    %1652 = vmatprep.subr.mxu0 0.0
    %1653 = vmatpush2.msra.mxu0 0.0
    %1654 = vmatprep.subr.mxu0 0.0
    %1655 = vmatpush2.msra.mxu0 0.0
    %1656 = vmatprep.subr.mxu0 0.0
    %1657 = vmatpush2.msra.mxu0 0.0
    %1658 = vmatprep.subr.mxu0 0.0
    %1659 = vmatpush2.msra.mxu0 0.0
    %1660 = vmatprep.subr.mxu0 0.0
    %1661 = vmatpush2.msra.mxu0 0.0
    %1662 = vmatprep.subr.mxu0 0.0
    %1663 = vmatpush2.msra.mxu0 0.0
    %1664 = vmatprep.subr.mxu0 0.0
    %1665 = vmatpush2.msra.mxu0 0.0
    %1666 = vmatprep.subr.mxu0 0.0
    %1667 = vmatpush2.msra.mxu0 0.0
    %1668 = vmatprep.subr.mxu0 0.0
    %1669 = vmatpush2.msra.mxu0 0.0
    %1670 = vmatprep.mubr.f32.mxu0 0.0
    %1671 = vmatmul.mubr.f32.gmra.mxu0 %v1601
    %v1672 = vpop.f32.mrf.mxu0
    %v1673 = vadd.f32 %v1598, %v1672
    %v1674 = vpop.f32.mrf.mxu0
    %1675 = vmatprep.mubr.f32.mxu0 0.0
    %1676 = vmatmul.mubr.f32.gmra.mxu0 %v1604
    %v1677 = vpop.f32.mrf.mxu0
    %v1678 = vadd.f32 %v1598, %v1677
    %v1679 = vpop.f32.mrf.mxu0
    %1680 = vdwg.mxu0
    %v1681 = vlaneseq
    %v1682 = vand.u32 %v1681, 127
    %vm1683 = vcmp.lt.s32.totalorder %v1682, 8
    %v1684 = vsel %vm1683, %v1673, -1e+30
    %v1685 = vsel %vm1683, %v1678, -1e+30
    %1686 = vmax.xlane.f32.xlu0 %v1684
    %v1687 = vpop.xlane.xlu0 %1686
    %1688 = vmax.xlane.f32.xlu0 %v1685
    %v1689 = vpop.xlane.xlu0 %1688
    %v1690 = vsub.f32 %v1684, %v1687
    %v1691 = vsub.f32 %v1685, %v1689
    %v1692 = vmul.f32 %v1690, 1.442695
    %v1693 = vpow.pop %v1692
    %v1694 = vmul.f32 %v1691, 1.442695
    %v1695 = vpow.pop %v1694
    %v1696 = vsel %vm1683, %v1693, 0.0
    %v1697 = vsel %vm1683, %v1695, 0.0
    %1698 = vadd.xlane.f32.xlu0 %v1696
    %v1699 = vpop.xlane.xlu0 %1698
    %1700 = vadd.xlane.f32.xlu0 %v1697
    %v1701 = vpop.xlane.xlu0 %1700
    %v1702 = vlog2.pop %v1699
    %v1703 = vmul.f32 %v1702, 0.6931472
    %v1704 = vlog2.pop %v1701
    %v1705 = vmul.f32 %v1704, 0.6931472
    %v1706 = vsub.f32 %v1690, %v1703
    %v1707 = vsub.f32 %v1691, %v1705
    %v1708 = vsel %vm1683, %v1706, 0.0
    %v1709 = vsel %vm1683, %v1707, 0.0
    %1710 = vst [vmem:[#allocation14] sm:$0xff] %v1708
    %1711 = vst [vmem:[#allocation14 + $0x8] sm:$0xff] %v1709
    // Predicated region
    $region66: #{tpu_custom_call.1} parent=1 // pred_check
      _
    $region67: #{tpu_custom_call.1} parent=1 // pred_check_branch
      %1713 = sbr.rel (0) target = $region69
    $region68: #{tpu_custom_call.1} parent=1 // pred_region
      %s1715 = ssub.s32 256, 256
      %1716 = vsyncadd [#allocation5], %s1715
      %s1717 = sshll.u32 [#allocation14], 4
      %s1718 = int_to_ptr.vmem [resolvable:$true] %s1717
      %1723 = dma.vmem_to_hbm [thread:$0]  %s1718, 256, %s10, [#allocation5], 128, 128, 8
    $region69: #{tpu_custom_call.1} parent=1 // pred_fallthru
      _
    // Predicated region
    $region70: #{tpu_custom_call.1} parent=1 // pred_check
      _
    $region71: #{tpu_custom_call.1} parent=1 // pred_check_branch
      %1725 = sbr.rel (0) target = $region73
    $region72: #{tpu_custom_call.1} parent=1 // pred_region
      %1726 = dma.done [#allocation5], 256
    $region73: #{tpu_custom_call.1} parent=1 // pred_fallthru
      _
    %1727 = vsyncpa [#allocation4], 1
    %1728 = vsyncpa [#allocation7], 1
    %1729 = vsyncpa [#allocation10], 1
    %1730 = vsyncpa [#allocation13], 1
    %1731 = vsyncpa [#allocation5], 1

</llo_original>
